<compile_context>
chip_gen: v7x
topology: tpu7x:2x2x1
jax: 0.10.0
libtpu: 0.0.40
codegen_flags: <defaults>
</compile_context>

<pallas_src>
import math

import jax
import jax.numpy as jnp
from jax import lax
from jax.experimental import pallas as pl
from jax.experimental.pallas import tpu as pltpu


def _round_up(x, m):
    return ((x + m - 1) // m) * m


def _pick_clouds_per_block(batch, max_bc=8):
    """Largest divisor of `batch` <= max_bc, preferring >= 2 cloud groups (v7x: 2 TCs)."""
    divisors = [d for d in range(1, min(max_bc, batch) + 1) if batch % d == 0]
    two_groups = [d for d in divisors if batch // d >= 2]
    return max(two_groups) if two_groups else max(divisors)


def _pick_point_tile(n, max_tn):
    """Whole cloud if it fits; else the largest 128-multiple divisor of n (no padding)."""
    if n <= max_tn:
        return n
    step = max(128, (max_tn // 128) * 128)
    for cand in range(step, 127, -128):
        if n % cand == 0:
            return cand
    return step  # no divisor: caller pads the point axis (rare; N is usually 2^k)


# ------------------------------ Pallas kernel -------------------------------


def _fused_encoder_decoder_kernel(pts_ref,
                                  w1_ref, w2_ref, b2_ref,
                                  w3_ref, b3_ref, w4_ref, b4_ref,
                                  w5_ref, b5_ref, w6_ref, b6_ref,
                                  out_ref, pooled_ref):
    """Fused encoder + decoder, transposed ("features x points") orientation.

    grid = (cloud groups [parallel], point tiles [arbitrary]).
    NOTE: the point-tile (reduction) axis MUST stay the innermost/fastest grid axis:
    pooled_ref is (re)initialised at t == 0 for every cloud group.

    pts_ref block : (Bc, 4, TN) f32   rows = [x/r, y/r, z/r, 1]  (1/radius folded in)
    out_ref block : (1, OUT8, Bc) f32 transposed decoder output (radius folded in)
    pooled_ref    : VMEM scratch (H2, Bc) f32 — per-cloud max-pool accumulator.
    """
    t = pl.program_id(1)
    n_tiles = pl.num_programs(1)
    bc = pooled_ref.shape[1]
    h2_dim = w2_ref.shape[0]
    tn = pts_ref.shape[2]
    cd = w2_ref.dtype

    @pl.when(t == 0)
    def _init():
        pooled_ref[...] = jnp.full(pooled_ref.shape, -jnp.inf, pooled_ref.dtype)

    w1t = w1_ref[...]                                       # (H1, 4) f32, bias in col 3
    w2t = w2_ref[...]                                       # (H2, H1) bf16
    # Hoist the layer-2 bias broadcast out of the per-cloud loop (no CSE of
    # broadcast_in_dim inside loops).
    b2b = jnp.broadcast_to(b2_ref[...], (h2_dim, tn))       # (H2, TN) f32
    col_ids = lax.broadcasted_iota(jnp.int32, pooled_ref.shape, 1)

    def cloud_body(c, carry):
        pts_c = pts_ref[c]                                  # (4, TN) f32, lane-dense
        # layer 1 on the MXU (K=4, f32 operands -> coordinate precision preserved)
        h1 = jnp.dot(w1t, pts_c, preferred_element_type=jnp.float32)
        h1 = jnp.maximum(h1, 0.0)                           # (H1, TN) f32
        # layer 2 (FLOP hot spot): bf16 operands, f32 accumulation
        h2 = jnp.dot(w2t, h1.astype(cd),
                     preferred_element_type=jnp.float32) + b2b
        h2 = jnp.maximum(h2, 0.0)                           # (H2, TN) f32
        # per-cloud global max pool over the lane (point) axis -> (H2, 1)
        m = jnp.max(h2, axis=1, keepdims=True)
        pooled_ref[...] = jnp.where(col_ids == c,
                                    jnp.maximum(pooled_ref[...], m),
                                    pooled_ref[...])
        return carry

    # fori_loop (not a static Python loop) bounds the live ranges of the big
    # per-cloud (H1/H2, TN) temporaries -> VMEM stays small even for big tiles.
    lax.fori_loop(0, bc, cloud_body, 0)

    # Last point tile: latent projection + decoder, batched over the Bc clouds
    # of this group (clouds live on the lane axis).
    @pl.when(t == n_tiles - 1)
    def _decode():
        pooled = pooled_ref[...]                            # (H2, Bc) f32
        enc = jnp.dot(w3_ref[...], pooled.astype(cd),
                      preferred_element_type=jnp.float32) + b3_ref[...]   # (L, Bc)
        h = jnp.dot(w4_ref[...], enc.astype(cd),
                    preferred_element_type=jnp.float32) + b4_ref[...]
        h = jnp.maximum(h, 0.0)                             # (H1, Bc)
        h = jnp.dot(w5_ref[...], h.astype(cd),
                    preferred_element_type=jnp.float32) + b5_ref[...]
        h = jnp.maximum(h, 0.0)                             # (H2, Bc)
        dec = jnp.dot(w6_ref[...], h.astype(cd),
                      preferred_element_type=jnp.float32) + b6_ref[...]   # (OUT8, Bc)
        out_ref[0] = dec


# ------------------------------ Module wrapper -------------------------------


class SingleLayerNetworkPallas:
    """final_layer=True, nb_layers=1 configuration of SingleLayerNetwork."""

    def __init__(self, nb_layers, nbs_neighbors, final_layer, radius, key,
                 h1=64, h2=128, latent=32, compute_dtype=jnp.bfloat16,
                 max_tile_n=4096, max_clouds_per_block=8):
        assert nb_layers == len(nbs_neighbors)
        assert final_layer and nb_layers == 1, (
            "Only the final_layer / single-layer configuration is implemented "
            "(no gnn.fps / gnn.radius needed).")
        self.nb_layers = nb_layers
        self.nbs_neighbors = nbs_neighbors
        self.final_layer = final_layer
        self.radius = float(radius)
        self.h1, self.h2, self.latent = h1, h2, latent
        self.max_tile_n = int(max_tile_n)
        self.max_clouds_per_block = int(max_clouds_per_block)
        self.k = nbs_neighbors[-1]
        self.cd = compute_dtype

        out_dim = 3 * self.k
        self.out_dim = out_dim
        self.out_pad = _round_up(out_dim, 8)      # sublane-padded decoder row count

        ks = jax.random.split(key, 12)

        def lin(kw, kb, fan_in, fan_out):
            bound = 1.0 / math.sqrt(fan_in)
            # torch nn.Linear layout (out, in) == the transposed (W x) orientation
            # the kernel computes in.
            w = jax.random.uniform(kw, (fan_out, fan_in), jnp.float32, -bound, bound)
            b = jax.random.uniform(kb, (fan_out,), jnp.float32, -bound, bound)
            return w, b

        w1, b1 = lin(ks[0], ks[1], 3, h1)
        w2, b2 = lin(ks[2], ks[3], h1, h2)
        w3, b3 = lin(ks[4], ks[5], h2, latent)
        w4, b4 = lin(ks[6], ks[7], latent, h1)
        w5, b5 = lin(ks[8], ks[9], h1, h2)
        w6, b6 = lin(ks[10], ks[11], h2, out_dim)

        # Fold 1/radius into layer 1 and fold b1 in as a 4th "ones" input column;
        # fold radius into the final layer; pad its rows to a multiple of 8.
        self.w1t = jnp.concatenate([w1 / self.radius, b1[:, None]], axis=1)  # (H1,4) f32
        self.w2t = w2.astype(compute_dtype)          # (H2, H1)
        self.b2t = b2[:, None]                       # (H2, 1) f32
        self.w3t = w3.astype(compute_dtype)          # (L,  H2)
        self.b3t = b3[:, None]
        self.w4t = w4.astype(compute_dtype)          # (H1, L)
        self.b4t = b4[:, None]
        self.w5t = w5.astype(compute_dtype)          # (H2, H1)
        self.b5t = b5[:, None]
        w6r = jnp.zeros((self.out_pad, h2), jnp.float32).at[:out_dim].set(w6 * self.radius)
        b6r = jnp.zeros((self.out_pad, 1), jnp.float32).at[:out_dim, 0].set(b6 * self.radius)
        self.w6t = w6r.astype(compute_dtype)         # (OUT8, H2)
        self.b6t = b6r                               # (OUT8, 1) f32

    # ---------------------------------------------------------------------

    def forward(self, points_dense):
        """points_dense: (B, N, 3) float32 — dense per-cloud point layout."""
        B, N, _ = points_dense.shape

        # glue: flattened original points + their cluster ids (== batch attribute)
        original_points = points_dense.reshape(B * N, 3)
        cluster = jnp.repeat(jnp.arange(B, dtype=jnp.int32), N)

        bc = _pick_clouds_per_block(B, self.max_clouds_per_block)
        n_groups = B // bc
        tn = _pick_point_tile(N, self.max_tile_n)
        n_pad = _round_up(N, tn)

        # Lane-dense points layout: (B, 4, N) with a constant 1.0 row so the
        # layer-1 bias rides inside the matmul; points sit on the fast lane axis.
        pts_t = jnp.transpose(points_dense.astype(jnp.float32), (0, 2, 1))   # (B,3,N)
        ones = jnp.ones((B, 1, N), jnp.float32)
        pts_aug = jnp.concatenate([pts_t, ones], axis=1)                     # (B,4,N)
        if n_pad != N:  # only when no divisor tile exists; duplicates are max-pool safe
            pad = jnp.broadcast_to(pts_aug[:, :, -1:], (B, 4, n_pad - N))
            pts_aug = jnp.concatenate([pts_aug, pad], axis=2)
        n_tiles = n_pad // tn

        weights = (self.w1t, self.w2t, self.b2t, self.w3t, self.b3t,
                   self.w4t, self.b4t, self.w5t, self.b5t, self.w6t, self.b6t)

        def w_spec(a):
            # Grid-invariant: same block every step -> stays resident in VMEM.
            return pl.BlockSpec(a.shape, lambda g, t: (0, 0))

        out_t = pl.pallas_call(
            _fused_encoder_decoder_kernel,
            out_shape=jax.ShapeDtypeStruct((n_groups, self.out_pad, bc), jnp.float32),
            grid_spec=pltpu.PrefetchScalarGridSpec(
                num_scalar_prefetch=0,
                # point-tile (reduction) axis must be innermost — see kernel docstring
                grid=(n_groups, n_tiles),
                in_specs=[pl.BlockSpec((bc, 4, tn), lambda g, t: (g, 0, t))]
                         + [w_spec(a) for a in weights],
                out_specs=pl.BlockSpec((1, self.out_pad, bc), lambda g, t: (g, 0, 0)),
                scratch_shapes=[pltpu.VMEM((self.h2, bc), jnp.float32)],
            ),
            compiler_params=pltpu.CompilerParams(
                dimension_semantics=("parallel", "arbitrary"),
                # 40 MiB: above v5e/v6e's 16/32 MiB scoped defaults (so big point
                # tiles never hit the artificial cap) and within v7x's 64 MiB VMEM.
                vmem_limit_bytes=40 * 1024 * 1024),
        )(pts_aug, *weights)

        # (n_groups, OUT8, Bc) -> (B, OUT8) -> (B*K, 3); tiny, done in XLA.
        dec = jnp.transpose(out_t, (0, 2, 1)).reshape(B, self.out_pad)[:, :self.out_dim]
        out = dec.reshape(B * self.k, 3)
        cluster_decoded = jnp.repeat(jnp.arange(B, dtype=jnp.int32), self.k)
        return original_points, cluster, out, cluster_decoded

    # Pure-JAX reference mirroring the kernel math (same folded weights / dtypes).
    def forward_ref(self, points_dense):
        B, N, _ = points_dense.shape
        x = points_dense.astype(jnp.float32).reshape(B * N, 3)
        xa = jnp.concatenate([x, jnp.ones((B * N, 1), jnp.float32)], axis=1)
        h1 = jnp.maximum(
            jnp.dot(xa, self.w1t.T, precision=jax.lax.Precision.HIGHEST,
                    preferred_element_type=jnp.float32), 0.0)
        h2 = jnp.maximum(
            jnp.dot(h1.astype(self.cd), self.w2t.T,
                    preferred_element_type=jnp.float32) + self.b2t.T, 0.0)
        pooled = jnp.max(h2.reshape(B, N, -1), axis=1)                 # (B, H2)
        enc = jnp.dot(pooled.astype(self.cd), self.w3t.T,
                      preferred_element_type=jnp.float32) + self.b3t.T
        h = jnp.maximum(jnp.dot(enc.astype(self.cd), self.w4t.T,
                                preferred_element_type=jnp.float32) + self.b4t.T, 0.0)
        h = jnp.maximum(jnp.dot(h.astype(self.cd), self.w5t.T,
                                preferred_element_type=jnp.float32) + self.b5t.T, 0.0)
        dec = jnp.dot(h.astype(self.cd), self.w6t.T,
                      preferred_element_type=jnp.float32) + self.b6t.T
        return dec[:, :self.out_dim].reshape(B * self.k, 3)


# ------------------------------------ main -----------------------------------


if __name__ == "__main__":
    key = jax.random.PRNGKey(0)
    k_param, k_pts = jax.random.split(key)

    # small but path-covering shapes: 8 clouds -> 2 cloud groups of 4 (parallel axis
    # extent 2 for v7x), 1024 points/cloud with 512-point tiles -> 2 reduction tiles.
    B, N = 8, 1024
    net = SingleLayerNetworkPallas(
        nb_layers=1, nbs_neighbors=[8], final_layer=True, radius=0.5,
        key=k_param, max_tile_n=512)

    points = jax.random.normal(k_pts, (B, N, 3), jnp.float32) * 0.3

    original_points, cluster, out, cluster_decoded = net.forward(points)
    jax.block_until_ready(out)

    # sanity check against the pure-JAX reference
    out_ref = net.forward_ref(points)
    assert original_points.shape == (B * N, 3)
    assert cluster.shape == (B * N,)
    assert out.shape == (B * net.k, 3)
    assert cluster_decoded.shape == (B * net.k,)
    max_err = float(jnp.max(jnp.abs(out - out_ref)))
    assert jnp.allclose(out, out_ref, atol=2e-3, rtol=2e-3), max_err

    print("KERNEL_OK")
</pallas_src>

<mosaic_0001>
module attributes {stable_mosaic.version = 11 : i64} {
  func.func @_fused_encoder_decoder_kernel(%arg0: i32, %arg1: i32, %arg2: memref<4x4x512xf32, #tpu.memory_space<vmem>>, %arg3: memref<64x4xf32, #tpu.memory_space<vmem>>, %arg4: memref<128x64xbf16, #tpu.memory_space<vmem>>, %arg5: memref<128x1xf32, #tpu.memory_space<vmem>>, %arg6: memref<32x128xbf16, #tpu.memory_space<vmem>>, %arg7: memref<32x1xf32, #tpu.memory_space<vmem>>, %arg8: memref<64x32xbf16, #tpu.memory_space<vmem>>, %arg9: memref<64x1xf32, #tpu.memory_space<vmem>>, %arg10: memref<128x64xbf16, #tpu.memory_space<vmem>>, %arg11: memref<128x1xf32, #tpu.memory_space<vmem>>, %arg12: memref<24x128xbf16, #tpu.memory_space<vmem>>, %arg13: memref<24x1xf32, #tpu.memory_space<vmem>>, %arg14: memref<1x24x4xf32, #tpu.memory_space<vmem>>, %arg15: memref<128x4xf32, #tpu.memory_space<vmem>>) attributes {dimension_semantics = [#tpu.dimension_semantics<parallel>, #tpu.dimension_semantics<arbitrary>], iteration_bounds = array<i64: 2, 2>, scalar_prefetch = 0 : i64, scratch_operands = 1 : i64, tpu.core_type = #tpu.core_type<tc>, window_params = [{transform_indices = @transform_0, window_bounds = array<i64: 4, 4, 512>}, {pipeline_mode = #tpu.pipeline_mode<synchronous>, transform_indices = @transform_1, window_bounds = array<i64: 64, 4>}, {pipeline_mode = #tpu.pipeline_mode<synchronous>, transform_indices = @transform_2, window_bounds = array<i64: 128, 64>}, {pipeline_mode = #tpu.pipeline_mode<synchronous>, transform_indices = @transform_3, window_bounds = array<i64: 128, 1>}, {pipeline_mode = #tpu.pipeline_mode<synchronous>, transform_indices = @transform_4, window_bounds = array<i64: 32, 128>}, {pipeline_mode = #tpu.pipeline_mode<synchronous>, transform_indices = @transform_5, window_bounds = array<i64: 32, 1>}, {pipeline_mode = #tpu.pipeline_mode<synchronous>, transform_indices = @transform_6, window_bounds = array<i64: 64, 32>}, {pipeline_mode = #tpu.pipeline_mode<synchronous>, transform_indices = @transform_7, window_bounds = array<i64: 64, 1>}, {pipeline_mode = #tpu.pipeline_mode<synchronous>, transform_indices = @transform_8, window_bounds = array<i64: 128, 64>}, {pipeline_mode = #tpu.pipeline_mode<synchronous>, transform_indices = @transform_9, window_bounds = array<i64: 128, 1>}, {pipeline_mode = #tpu.pipeline_mode<synchronous>, transform_indices = @transform_10, window_bounds = array<i64: 24, 128>}, {pipeline_mode = #tpu.pipeline_mode<synchronous>, transform_indices = @transform_11, window_bounds = array<i64: 24, 1>}, {transform_indices = @transform_12, window_bounds = array<i64: 1, 24, 4>}]} {
    %c0_i32 = arith.constant 0 : i32
    %0 = arith.cmpi eq, %arg1, %c0_i32 : i32
    %1 = arith.extui %0 : i1 to i32
    %c0_i32_0 = arith.constant 0 : i32
    %2 = arith.cmpi ne, %1, %c0_i32_0 : i32
    scf.if %2 {
      %cst = arith.constant 0xFF800000 : f32
      %13 = vector.broadcast %cst : f32 to vector<128x4xf32>
      %c0_10 = arith.constant 0 : index
      %c0_11 = arith.constant 0 : index
      %14 = vector.load %arg15[%c0_10, %c0_11] : memref<128x4xf32, #tpu.memory_space<vmem>>, vector<128x4xf32>
      tpu.vector_store %arg15[%c0_10, %c0_11], %13 {strides = array<i32>} : memref<128x4xf32, #tpu.memory_space<vmem>>, vector<128x4xf32>,
    } else {
    }
    %c0 = arith.constant 0 : index
    %c0_1 = arith.constant 0 : index
    %3 = vector.load %arg3[%c0, %c0_1] : memref<64x4xf32, #tpu.memory_space<vmem>>, vector<64x4xf32>
    %c0_2 = arith.constant 0 : index
    %c0_3 = arith.constant 0 : index
    %4 = vector.load %arg4[%c0_2, %c0_3] : memref<128x64xbf16, #tpu.memory_space<vmem>>, vector<128x64xbf16>
    %c0_4 = arith.constant 0 : index
    %c0_5 = arith.constant 0 : index
    %5 = vector.load %arg5[%c0_4, %c0_5] : memref<128x1xf32, #tpu.memory_space<vmem>>, vector<128x1xf32>
    %6 = vector.shape_cast %5 : vector<128x1xf32> to vector<128x1xf32>
    %7 = vector.broadcast %6 : vector<128x1xf32> to vector<128x512xf32>
    %8 = tpu.iota {dimensions = array<i32: 1>} : vector<128x4xi32>
    %c0_i32_6 = arith.constant 0 : i32
    %c4_i32 = arith.constant 4 : i32
    %9 = arith.addi %c0_i32_6, %c4_i32 : i32
    %c1_i32 = arith.constant 1 : i32
    scf.for %arg16 = %c0_i32_6 to %9 step %c1_i32  : i32 {
      %13 = arith.index_cast %arg16 : i32 to index
      %c0_10 = arith.constant 0 : index
      %c0_11 = arith.constant 0 : index
      %14 = vector.load %arg2[%13, %c0_10, %c0_11] : memref<4x4x512xf32, #tpu.memory_space<vmem>>, vector<1x4x512xf32>
      %15 = vector.shape_cast %14 : vector<1x4x512xf32> to vector<4x512xf32>
      %cst = arith.constant dense<0.000000e+00> : vector<64x512xf32>
      %16 = tpu.matmul %3, %15, %cst {dimension_numbers = #tpu.dot_dimension_numbers<[1], [0], [0], [1], [0, 0, 1, 1], [], []>} : vector<64x4xf32>, vector<4x512xf32>, vector<64x512xf32> -> vector<64x512xf32>
      %cst_12 = arith.constant 0.000000e+00 : f32
      %17 = vector.broadcast %cst_12 : f32 to vector<64x512xf32>
      %18 = arith.maximumf %16, %17 : vector<64x512xf32>
      %19 = arith.truncf %18 : vector<64x512xf32> to vector<64x512xbf16>
      %cst_13 = arith.constant dense<0.000000e+00> : vector<128x512xf32>
      %20 = tpu.matmul %4, %19, %cst_13 {dimension_numbers = #tpu.dot_dimension_numbers<[1], [0], [0], [1], [0, 0, 1, 1], [], []>} : vector<128x64xbf16>, vector<64x512xbf16>, vector<128x512xf32> -> vector<128x512xf32>
      %21 = arith.addf %20, %7 : vector<128x512xf32>
      %cst_14 = arith.constant 0.000000e+00 : f32
      %22 = vector.broadcast %cst_14 : f32 to vector<128x512xf32>
      %23 = arith.maximumf %21, %22 : vector<128x512xf32>
      %cst_15 = arith.constant dense<0xFF800000> : vector<128xf32>
      %24 = vector.multi_reduction <maximumf>, %23, %cst_15 [1] : vector<128x512xf32> to vector<128xf32>
      %25 = vector.shape_cast %24 : vector<128xf32> to vector<128x1xf32>
      %26 = vector.broadcast %arg16 : i32 to vector<128x4xi32>
      %27 = arith.cmpi eq, %8, %26 : vector<128x4xi32>
      %c0_16 = arith.constant 0 : index
      %c0_17 = arith.constant 0 : index
      %28 = vector.load %arg15[%c0_16, %c0_17] : memref<128x4xf32, #tpu.memory_space<vmem>>, vector<128x4xf32>
      %29 = vector.broadcast %25 : vector<128x1xf32> to vector<128x4xf32>
      %30 = arith.maximumf %28, %29 : vector<128x4xf32>
      %c0_18 = arith.constant 0 : index
      %c0_19 = arith.constant 0 : index
      %31 = vector.load %arg15[%c0_18, %c0_19] : memref<128x4xf32, #tpu.memory_space<vmem>>, vector<128x4xf32>
      %32 = arith.select %27, %30, %31 : vector<128x4xi1>, vector<128x4xf32>
      %c0_20 = arith.constant 0 : index
      %c0_21 = arith.constant 0 : index
      %33 = vector.load %arg15[%c0_20, %c0_21] : memref<128x4xf32, #tpu.memory_space<vmem>>, vector<128x4xf32>
      tpu.vector_store %arg15[%c0_20, %c0_21], %32 {strides = array<i32>} : memref<128x4xf32, #tpu.memory_space<vmem>>, vector<128x4xf32>,
    }
    %c4_i32_7 = arith.constant 4 : i32
    %c1_i32_8 = arith.constant 1 : i32
    %10 = arith.cmpi eq, %arg1, %c1_i32_8 : i32
    %11 = arith.extui %10 : i1 to i32
    %c0_i32_9 = arith.constant 0 : i32
    %12 = arith.cmpi ne, %11, %c0_i32_9 : i32
    scf.if %12 {
      %c0_10 = arith.constant 0 : index
      %c0_11 = arith.constant 0 : index
      %13 = vector.load %arg15[%c0_10, %c0_11] : memref<128x4xf32, #tpu.memory_space<vmem>>, vector<128x4xf32>
      %c0_12 = arith.constant 0 : index
      %c0_13 = arith.constant 0 : index
      %14 = vector.load %arg6[%c0_12, %c0_13] : memref<32x128xbf16, #tpu.memory_space<vmem>>, vector<32x128xbf16>
      %15 = arith.truncf %13 : vector<128x4xf32> to vector<128x4xbf16>
      %cst = arith.constant dense<0.000000e+00> : vector<32x4xf32>
      %16 = tpu.matmul %14, %15, %cst {dimension_numbers = #tpu.dot_dimension_numbers<[1], [0], [0], [1], [0, 0, 1, 1], [], []>} : vector<32x128xbf16>, vector<128x4xbf16>, vector<32x4xf32> -> vector<32x4xf32>
      %c0_14 = arith.constant 0 : index
      %c0_15 = arith.constant 0 : index
      %17 = vector.load %arg7[%c0_14, %c0_15] : memref<32x1xf32, #tpu.memory_space<vmem>>, vector<32x1xf32>
      %18 = vector.broadcast %17 : vector<32x1xf32> to vector<32x4xf32>
      %19 = arith.addf %16, %18 : vector<32x4xf32>
      %c0_16 = arith.constant 0 : index
      %c0_17 = arith.constant 0 : index
      %20 = vector.load %arg8[%c0_16, %c0_17] : memref<64x32xbf16, #tpu.memory_space<vmem>>, vector<64x32xbf16>
      %21 = arith.truncf %19 : vector<32x4xf32> to vector<32x4xbf16>
      %cst_18 = arith.constant dense<0.000000e+00> : vector<64x4xf32>
      %22 = tpu.matmul %20, %21, %cst_18 {dimension_numbers = #tpu.dot_dimension_numbers<[1], [0], [0], [1], [0, 0, 1, 1], [], []>} : vector<64x32xbf16>, vector<32x4xbf16>, vector<64x4xf32> -> vector<64x4xf32>
      %c0_19 = arith.constant 0 : index
      %c0_20 = arith.constant 0 : index
      %23 = vector.load %arg9[%c0_19, %c0_20] : memref<64x1xf32, #tpu.memory_space<vmem>>, vector<64x1xf32>
      %24 = vector.broadcast %23 : vector<64x1xf32> to vector<64x4xf32>
      %25 = arith.addf %22, %24 : vector<64x4xf32>
      %cst_21 = arith.constant 0.000000e+00 : f32
      %26 = vector.broadcast %cst_21 : f32 to vector<64x4xf32>
      %27 = arith.maximumf %25, %26 : vector<64x4xf32>
      %c0_22 = arith.constant 0 : index
      %c0_23 = arith.constant 0 : index
      %28 = vector.load %arg10[%c0_22, %c0_23] : memref<128x64xbf16, #tpu.memory_space<vmem>>, vector<128x64xbf16>
      %29 = arith.truncf %27 : vector<64x4xf32> to vector<64x4xbf16>
      %cst_24 = arith.constant dense<0.000000e+00> : vector<128x4xf32>
      %30 = tpu.matmul %28, %29, %cst_24 {dimension_numbers = #tpu.dot_dimension_numbers<[1], [0], [0], [1], [0, 0, 1, 1], [], []>} : vector<128x64xbf16>, vector<64x4xbf16>, vector<128x4xf32> -> vector<128x4xf32>
      %c0_25 = arith.constant 0 : index
      %c0_26 = arith.constant 0 : index
      %31 = vector.load %arg11[%c0_25, %c0_26] : memref<128x1xf32, #tpu.memory_space<vmem>>, vector<128x1xf32>
      %32 = vector.broadcast %31 : vector<128x1xf32> to vector<128x4xf32>
      %33 = arith.addf %30, %32 : vector<128x4xf32>
      %cst_27 = arith.constant 0.000000e+00 : f32
      %34 = vector.broadcast %cst_27 : f32 to vector<128x4xf32>
      %35 = arith.maximumf %33, %34 : vector<128x4xf32>
      %c0_28 = arith.constant 0 : index
      %c0_29 = arith.constant 0 : index
      %36 = vector.load %arg12[%c0_28, %c0_29] : memref<24x128xbf16, #tpu.memory_space<vmem>>, vector<24x128xbf16>
      %37 = arith.truncf %35 : vector<128x4xf32> to vector<128x4xbf16>
      %cst_30 = arith.constant dense<0.000000e+00> : vector<24x4xf32>
      %38 = tpu.matmul %36, %37, %cst_30 {dimension_numbers = #tpu.dot_dimension_numbers<[1], [0], [0], [1], [0, 0, 1, 1], [], []>} : vector<24x128xbf16>, vector<128x4xbf16>, vector<24x4xf32> -> vector<24x4xf32>
      %c0_31 = arith.constant 0 : index
      %c0_32 = arith.constant 0 : index
      %39 = vector.load %arg13[%c0_31, %c0_32] : memref<24x1xf32, #tpu.memory_space<vmem>>, vector<24x1xf32>
      %40 = vector.broadcast %39 : vector<24x1xf32> to vector<24x4xf32>
      %41 = arith.addf %38, %40 : vector<24x4xf32>
      %c0_33 = arith.constant 0 : index
      %c0_34 = arith.constant 0 : index
      %c0_35 = arith.constant 0 : index
      %42 = vector.load %arg14[%c0_33, %c0_34, %c0_35] : memref<1x24x4xf32, #tpu.memory_space<vmem>>, vector<1x24x4xf32>
      %43 = vector.shape_cast %42 : vector<1x24x4xf32> to vector<24x4xf32>
      %44 = vector.shape_cast %41 : vector<24x4xf32> to vector<1x24x4xf32>
      tpu.vector_store %arg14[%c0_33, %c0_34, %c0_35], %44 {strides = array<i32>} : memref<1x24x4xf32, #tpu.memory_space<vmem>>, vector<1x24x4xf32>,
    } else {
    }
    return
  }
  func.func @transform_0(%arg0: i32, %arg1: i32) -> (i32, i32, i32) {
    %c0_i32 = arith.constant 0 : i32
    %c0_i32_0 = arith.constant 0 : i32
    return %arg0, %c0_i32, %arg1 : i32, i32, i32
  }
  func.func @transform_1(%arg0: i32, %arg1: i32) -> (i32, i32) {
    %c0_i32 = arith.constant 0 : i32
    %c0_i32_0 = arith.constant 0 : i32
    %c0_i32_1 = arith.constant 0 : i32
    return %c0_i32, %c0_i32_0 : i32, i32
  }
  func.func @transform_2(%arg0: i32, %arg1: i32) -> (i32, i32) {
    %c0_i32 = arith.constant 0 : i32
    %c0_i32_0 = arith.constant 0 : i32
    %c0_i32_1 = arith.constant 0 : i32
    return %c0_i32, %c0_i32_0 : i32, i32
  }
  func.func @transform_3(%arg0: i32, %arg1: i32) -> (i32, i32) {
    %c0_i32 = arith.constant 0 : i32
    %c0_i32_0 = arith.constant 0 : i32
    %c0_i32_1 = arith.constant 0 : i32
    return %c0_i32, %c0_i32_0 : i32, i32
  }
  func.func @transform_4(%arg0: i32, %arg1: i32) -> (i32, i32) {
    %c0_i32 = arith.constant 0 : i32
    %c0_i32_0 = arith.constant 0 : i32
    %c0_i32_1 = arith.constant 0 : i32
    return %c0_i32, %c0_i32_0 : i32, i32
  }
  func.func @transform_5(%arg0: i32, %arg1: i32) -> (i32, i32) {
    %c0_i32 = arith.constant 0 : i32
    %c0_i32_0 = arith.constant 0 : i32
    %c0_i32_1 = arith.constant 0 : i32
    return %c0_i32, %c0_i32_0 : i32, i32
  }
  func.func @transform_6(%arg0: i32, %arg1: i32) -> (i32, i32) {
    %c0_i32 = arith.constant 0 : i32
    %c0_i32_0 = arith.constant 0 : i32
    %c0_i32_1 = arith.constant 0 : i32
    return %c0_i32, %c0_i32_0 : i32, i32
  }
  func.func @transform_7(%arg0: i32, %arg1: i32) -> (i32, i32) {
    %c0_i32 = arith.constant 0 : i32
    %c0_i32_0 = arith.constant 0 : i32
    %c0_i32_1 = arith.constant 0 : i32
    return %c0_i32, %c0_i32_0 : i32, i32
  }
  func.func @transform_8(%arg0: i32, %arg1: i32) -> (i32, i32) {
    %c0_i32 = arith.constant 0 : i32
    %c0_i32_0 = arith.constant 0 : i32
    %c0_i32_1 = arith.constant 0 : i32
    return %c0_i32, %c0_i32_0 : i32, i32
  }
  func.func @transform_9(%arg0: i32, %arg1: i32) -> (i32, i32) {
    %c0_i32 = arith.constant 0 : i32
    %c0_i32_0 = arith.constant 0 : i32
    %c0_i32_1 = arith.constant 0 : i32
    return %c0_i32, %c0_i32_0 : i32, i32
  }
  func.func @transform_10(%arg0: i32, %arg1: i32) -> (i32, i32) {
    %c0_i32 = arith.constant 0 : i32
    %c0_i32_0 = arith.constant 0 : i32
    %c0_i32_1 = arith.constant 0 : i32
    return %c0_i32, %c0_i32_0 : i32, i32
  }
  func.func @transform_11(%arg0: i32, %arg1: i32) -> (i32, i32) {
    %c0_i32 = arith.constant 0 : i32
    %c0_i32_0 = arith.constant 0 : i32
    %c0_i32_1 = arith.constant 0 : i32
    return %c0_i32, %c0_i32_0 : i32, i32
  }
  func.func @transform_12(%arg0: i32, %arg1: i32) -> (i32, i32, i32) {
    %c0_i32 = arith.constant 0 : i32
    %c0_i32_0 = arith.constant 0 : i32
    %c0_i32_1 = arith.constant 0 : i32
    return %arg0, %c0_i32, %c0_i32_0 : i32, i32, i32
  }
}

</mosaic_0001>

<llo_original>
// kernel: tpu_custom_call.1
$region0: #{tpu_custom_call.1}
  #allocation0 [shape = 'u32[]', space=smem, size = 0x4, offset = 0x4, fixed_abs, tag = 'smem constant byte address 0x4 - core index']
  #allocation1 [shape = 'u32[144,128]{1,0:T(1,128)}', space=vmem, size = 0x12000, scoped, tag = 'internal scratch']
  #allocation2 [shape = 'f32[128,4]{1,0:T(8,128)}', space=vmem, size = 0x10000, scoped, tag = 'scratch operand']
  %s0 = inlined_call_operand.vmem [shape: f32[8,4,1024], index: 0, kind: input, shape index: {}]
  %s1 = inlined_call_operand.vmem [shape: f32[64,4], index: 1, kind: input, shape index: {}]
  %s2 = inlined_call_operand.vmem [shape: bf16[128,64], index: 2, kind: input, shape index: {}]
  %s3 = inlined_call_operand.vmem [shape: f32[128,1], index: 3, kind: input, shape index: {}]
  %s4 = inlined_call_operand.vmem [shape: bf16[32,128], index: 4, kind: input, shape index: {}]
  %s5 = inlined_call_operand.vmem [shape: f32[32,1], index: 5, kind: input, shape index: {}]
  %s6 = inlined_call_operand.vmem [shape: bf16[64,32], index: 6, kind: input, shape index: {}]
  %s7 = inlined_call_operand.vmem [shape: f32[64,1], index: 7, kind: input, shape index: {}]
  %s8 = inlined_call_operand.vmem [shape: bf16[128,64], index: 8, kind: input, shape index: {}]
  %s9 = inlined_call_operand.vmem [shape: f32[128,1], index: 9, kind: input, shape index: {}]
  %s10 = inlined_call_operand.vmem [shape: bf16[24,128], index: 10, kind: input, shape index: {}]
  %s11 = inlined_call_operand.vmem [shape: f32[24,1], index: 11, kind: input, shape index: {}]
  %s12 = inlined_call_operand.vmem [shape: f32[2,24,4], index: 12, kind: output, shape index: {}]
  %s13 = sld [smem:[#allocation0]]
  $region119: #{tpu_custom_call.1} parent=0
    _
  %s15 = ssub.s32 1, %s13
  %s16 = scalar_select 0, %s15, %s13
  $region1: #{tpu_custom_call.1} parent=0
    #allocation3 [shape = 'u8[65536]{0}', space=vmem, size = 0x10000, scoped, tag = 'input window, operand 0']
    loop: start=0, step=1, limit=6
    $region2: #{tpu_custom_call.1} parent=1 // loop_pre_header
      _
    $region3: #{tpu_custom_call.1} parent=1 // loop_header
      %s18 = sphi 0, %s22
      %p19 = scmp.ge.s32.totalorder %s18, 6
      %s25 = sphi 0, %s37
      %s26 = sphi 0, %s33
      %s27 = sphi 0, %s25
      %s28 = sphi 0, %s26
      %s29 = sphi 0, %s27
      %s30 = sphi 0, %s28
      %s42 = sphi 0, %s44
      %s45 = sphi 0, %s42
      %s46 = sphi 0, %s45
      %s62 = sphi 0, %s46
      %s66 = sphi 0, %s66
      %s68 = sphi 0, %s66
      %s69 = sphi 0, %s68
      %s83 = sphi 0, %s69
      %s87 = sphi 0, %s87
      %s89 = sphi 0, %s87
      %s90 = sphi 0, %s89
      %s104 = sphi 0, %s90
      %s108 = sphi 0, %s108
      %s110 = sphi 0, %s108
      %s111 = sphi 0, %s110
      %s125 = sphi 0, %s111
      %s129 = sphi 0, %s129
      %s131 = sphi 0, %s129
      %s132 = sphi 0, %s131
      %s146 = sphi 0, %s132
      %s150 = sphi 0, %s150
      %s152 = sphi 0, %s150
      %s153 = sphi 0, %s152
      %s167 = sphi 0, %s153
      %s171 = sphi 0, %s171
      %s173 = sphi 0, %s171
      %s174 = sphi 0, %s173
      %s188 = sphi 0, %s174
      %s192 = sphi 0, %s192
      %s194 = sphi 0, %s192
      %s195 = sphi 0, %s194
      %s209 = sphi 0, %s195
      %s213 = sphi 0, %s213
      %s215 = sphi 0, %s213
      %s216 = sphi 0, %s215
      %s230 = sphi 0, %s216
      %s234 = sphi 0, %s234
      %s236 = sphi 0, %s234
      %s237 = sphi 0, %s236
      %s251 = sphi 0, %s237
      %s255 = sphi 0, %s255
      %s257 = sphi 0, %s255
      %s258 = sphi 0, %s257
      %s272 = sphi 0, %s258
      %s276 = sphi 0, %s276
      %s278 = sphi 0, %s276
      %s279 = sphi 0, %s278
      %s293 = sphi 0, %s279
      %s299 = sphi 0, %s301
      %s302 = sphi 0, %s299
      %s303 = sphi 0, %s302
      %s319 = sphi 0, %s303
    $region4: #{tpu_custom_call.1} parent=1 // loop_header_branch
      %21 = sbr.rel (%p19) target = $region8
    $region5: #{tpu_custom_call.1} parent=1 // loop_body
      %s23 = ssub.s32 %s18, 1
      %s24 = ssub.s32 %s18, 2
      %s31 = sadd.s32 1, %s26
      %p32 = scmp.ge.s32.totalorder %s31, 2
      %s33 = scalar_select %p32, 0, %s31
      %s34 = sadd.s32 1, %s25
      %s35 = scalar_select %p32, %s34, %s25
      %p36 = scmp.ge.s32.totalorder %s35, 2
      %s37 = scalar_select %p36, 0, %s35
      %s38 = ssub.s32 %s25, %s37
      %s39 = ssub.s32 %s26, %s33
      %s40 = sor.u32 %s38, %s39
      %p41 = scmp.eq.s32.totalorder %s40, 0
      %s43 = sadd.s32 %s42, 1
      %s44 = scalar_select %p41, %s42, %s43
      %p47 = pneg %p41
      %p48 = scmp.eq.s32.totalorder %s18, 3
      %p49 = por %p47, %p48
      %p50 = scmp.ne.s32.totalorder %s42, %s45
      %p51 = scmp.eq.s32.totalorder %s18, 0
      %p52 = por %p50, %p51
      %p53 = scmp.ne.s32.totalorder %s42, %s45
      %p54 = scmp.eq.s32.totalorder %s23, 3
      %p55 = por %p53, %p54
      %p56 = scmp.ne.s32.totalorder %s45, %s46
      %p57 = scmp.eq.s32.totalorder %s23, 0
      %p58 = por %p56, %p57
      %p59 = scmp.ne.s32.totalorder %s45, %s46
      %p60 = scmp.eq.s32.totalorder %s24, 3
      %p61 = por %p59, %p60
      %p63 = scmp.ne.s32.totalorder %s46, %s62
      %p64 = scmp.eq.s32.totalorder %s24, 0
      %p65 = por %p63, %p64
      %s67 = sadd.s32 %s66, 1
      %p70 = scmp.eq.s32.totalorder %s18, 3
      %p71 = scmp.ne.s32.totalorder %s66, %s68
      %p72 = scmp.eq.s32.totalorder %s18, 0
      %p73 = por %p71, %p72
      %p74 = scmp.ne.s32.totalorder %s66, %s68
      %p75 = scmp.eq.s32.totalorder %s23, 3
      %p76 = por %p74, %p75
      %p77 = scmp.ne.s32.totalorder %s68, %s69
      %p78 = scmp.eq.s32.totalorder %s23, 0
      %p79 = por %p77, %p78
      %p80 = scmp.ne.s32.totalorder %s68, %s69
      %p81 = scmp.eq.s32.totalorder %s24, 3
      %p82 = por %p80, %p81
      %p84 = scmp.ne.s32.totalorder %s69, %s83
      %p85 = scmp.eq.s32.totalorder %s24, 0
      %p86 = por %p84, %p85
      %s88 = sadd.s32 %s87, 1
      %p91 = scmp.eq.s32.totalorder %s18, 3
      %p92 = scmp.ne.s32.totalorder %s87, %s89
      %p93 = scmp.eq.s32.totalorder %s18, 0
      %p94 = por %p92, %p93
      %p95 = scmp.ne.s32.totalorder %s87, %s89
      %p96 = scmp.eq.s32.totalorder %s23, 3
      %p97 = por %p95, %p96
      %p98 = scmp.ne.s32.totalorder %s89, %s90
      %p99 = scmp.eq.s32.totalorder %s23, 0
      %p100 = por %p98, %p99
      %p101 = scmp.ne.s32.totalorder %s89, %s90
      %p102 = scmp.eq.s32.totalorder %s24, 3
      %p103 = por %p101, %p102
      %p105 = scmp.ne.s32.totalorder %s90, %s104
      %p106 = scmp.eq.s32.totalorder %s24, 0
      %p107 = por %p105, %p106
      %s109 = sadd.s32 %s108, 1
      %p112 = scmp.eq.s32.totalorder %s18, 3
      %p113 = scmp.ne.s32.totalorder %s108, %s110
      %p114 = scmp.eq.s32.totalorder %s18, 0
      %p115 = por %p113, %p114
      %p116 = scmp.ne.s32.totalorder %s108, %s110
      %p117 = scmp.eq.s32.totalorder %s23, 3
      %p118 = por %p116, %p117
      %p119 = scmp.ne.s32.totalorder %s110, %s111
      %p120 = scmp.eq.s32.totalorder %s23, 0
      %p121 = por %p119, %p120
      %p122 = scmp.ne.s32.totalorder %s110, %s111
      %p123 = scmp.eq.s32.totalorder %s24, 3
      %p124 = por %p122, %p123
      %p126 = scmp.ne.s32.totalorder %s111, %s125
      %p127 = scmp.eq.s32.totalorder %s24, 0
      %p128 = por %p126, %p127
      %s130 = sadd.s32 %s129, 1
      %p133 = scmp.eq.s32.totalorder %s18, 3
      %p134 = scmp.ne.s32.totalorder %s129, %s131
      %p135 = scmp.eq.s32.totalorder %s18, 0
      %p136 = por %p134, %p135
      %p137 = scmp.ne.s32.totalorder %s129, %s131
      %p138 = scmp.eq.s32.totalorder %s23, 3
      %p139 = por %p137, %p138
      %p140 = scmp.ne.s32.totalorder %s131, %s132
      %p141 = scmp.eq.s32.totalorder %s23, 0
      %p142 = por %p140, %p141
      %p143 = scmp.ne.s32.totalorder %s131, %s132
      %p144 = scmp.eq.s32.totalorder %s24, 3
      %p145 = por %p143, %p144
      %p147 = scmp.ne.s32.totalorder %s132, %s146
      %p148 = scmp.eq.s32.totalorder %s24, 0
      %p149 = por %p147, %p148
      %s151 = sadd.s32 %s150, 1
      %p154 = scmp.eq.s32.totalorder %s18, 3
      %p155 = scmp.ne.s32.totalorder %s150, %s152
      %p156 = scmp.eq.s32.totalorder %s18, 0
      %p157 = por %p155, %p156
      %p158 = scmp.ne.s32.totalorder %s150, %s152
      %p159 = scmp.eq.s32.totalorder %s23, 3
      %p160 = por %p158, %p159
      %p161 = scmp.ne.s32.totalorder %s152, %s153
      %p162 = scmp.eq.s32.totalorder %s23, 0
      %p163 = por %p161, %p162
      %p164 = scmp.ne.s32.totalorder %s152, %s153
      %p165 = scmp.eq.s32.totalorder %s24, 3
      %p166 = por %p164, %p165
      %p168 = scmp.ne.s32.totalorder %s153, %s167
      %p169 = scmp.eq.s32.totalorder %s24, 0
      %p170 = por %p168, %p169
      %s172 = sadd.s32 %s171, 1
      %p175 = scmp.eq.s32.totalorder %s18, 3
      %p176 = scmp.ne.s32.totalorder %s171, %s173
      %p177 = scmp.eq.s32.totalorder %s18, 0
      %p178 = por %p176, %p177
      %p179 = scmp.ne.s32.totalorder %s171, %s173
      %p180 = scmp.eq.s32.totalorder %s23, 3
      %p181 = por %p179, %p180
      %p182 = scmp.ne.s32.totalorder %s173, %s174
      %p183 = scmp.eq.s32.totalorder %s23, 0
      %p184 = por %p182, %p183
      %p185 = scmp.ne.s32.totalorder %s173, %s174
      %p186 = scmp.eq.s32.totalorder %s24, 3
      %p187 = por %p185, %p186
      %p189 = scmp.ne.s32.totalorder %s174, %s188
      %p190 = scmp.eq.s32.totalorder %s24, 0
      %p191 = por %p189, %p190
      %s193 = sadd.s32 %s192, 1
      %p196 = scmp.eq.s32.totalorder %s18, 3
      %p197 = scmp.ne.s32.totalorder %s192, %s194
      %p198 = scmp.eq.s32.totalorder %s18, 0
      %p199 = por %p197, %p198
      %p200 = scmp.ne.s32.totalorder %s192, %s194
      %p201 = scmp.eq.s32.totalorder %s23, 3
      %p202 = por %p200, %p201
      %p203 = scmp.ne.s32.totalorder %s194, %s195
      %p204 = scmp.eq.s32.totalorder %s23, 0
      %p205 = por %p203, %p204
      %p206 = scmp.ne.s32.totalorder %s194, %s195
      %p207 = scmp.eq.s32.totalorder %s24, 3
      %p208 = por %p206, %p207
      %p210 = scmp.ne.s32.totalorder %s195, %s209
      %p211 = scmp.eq.s32.totalorder %s24, 0
      %p212 = por %p210, %p211
      %s214 = sadd.s32 %s213, 1
      %p217 = scmp.eq.s32.totalorder %s18, 3
      %p218 = scmp.ne.s32.totalorder %s213, %s215
      %p219 = scmp.eq.s32.totalorder %s18, 0
      %p220 = por %p218, %p219
      %p221 = scmp.ne.s32.totalorder %s213, %s215
      %p222 = scmp.eq.s32.totalorder %s23, 3
      %p223 = por %p221, %p222
      %p224 = scmp.ne.s32.totalorder %s215, %s216
      %p225 = scmp.eq.s32.totalorder %s23, 0
      %p226 = por %p224, %p225
      %p227 = scmp.ne.s32.totalorder %s215, %s216
      %p228 = scmp.eq.s32.totalorder %s24, 3
      %p229 = por %p227, %p228
      %p231 = scmp.ne.s32.totalorder %s216, %s230
      %p232 = scmp.eq.s32.totalorder %s24, 0
      %p233 = por %p231, %p232
      %s235 = sadd.s32 %s234, 1
      %p238 = scmp.eq.s32.totalorder %s18, 3
      %p239 = scmp.ne.s32.totalorder %s234, %s236
      %p240 = scmp.eq.s32.totalorder %s18, 0
      %p241 = por %p239, %p240
      %p242 = scmp.ne.s32.totalorder %s234, %s236
      %p243 = scmp.eq.s32.totalorder %s23, 3
      %p244 = por %p242, %p243
      %p245 = scmp.ne.s32.totalorder %s236, %s237
      %p246 = scmp.eq.s32.totalorder %s23, 0
      %p247 = por %p245, %p246
      %p248 = scmp.ne.s32.totalorder %s236, %s237
      %p249 = scmp.eq.s32.totalorder %s24, 3
      %p250 = por %p248, %p249
      %p252 = scmp.ne.s32.totalorder %s237, %s251
      %p253 = scmp.eq.s32.totalorder %s24, 0
      %p254 = por %p252, %p253
      %s256 = sadd.s32 %s255, 1
      %p259 = scmp.eq.s32.totalorder %s18, 3
      %p260 = scmp.ne.s32.totalorder %s255, %s257
      %p261 = scmp.eq.s32.totalorder %s18, 0
      %p262 = por %p260, %p261
      %p263 = scmp.ne.s32.totalorder %s255, %s257
      %p264 = scmp.eq.s32.totalorder %s23, 3
      %p265 = por %p263, %p264
      %p266 = scmp.ne.s32.totalorder %s257, %s258
      %p267 = scmp.eq.s32.totalorder %s23, 0
      %p268 = por %p266, %p267
      %p269 = scmp.ne.s32.totalorder %s257, %s258
      %p270 = scmp.eq.s32.totalorder %s24, 3
      %p271 = por %p269, %p270
      %p273 = scmp.ne.s32.totalorder %s258, %s272
      %p274 = scmp.eq.s32.totalorder %s24, 0
      %p275 = por %p273, %p274
      %s277 = sadd.s32 %s276, 1
      %p280 = scmp.eq.s32.totalorder %s18, 3
      %p281 = scmp.ne.s32.totalorder %s276, %s278
      %p282 = scmp.eq.s32.totalorder %s18, 0
      %p283 = por %p281, %p282
      %p284 = scmp.ne.s32.totalorder %s276, %s278
      %p285 = scmp.eq.s32.totalorder %s23, 3
      %p286 = por %p284, %p285
      %p287 = scmp.ne.s32.totalorder %s278, %s279
      %p288 = scmp.eq.s32.totalorder %s23, 0
      %p289 = por %p287, %p288
      %p290 = scmp.ne.s32.totalorder %s278, %s279
      %p291 = scmp.eq.s32.totalorder %s24, 3
      %p292 = por %p290, %p291
      %p294 = scmp.ne.s32.totalorder %s279, %s293
      %p295 = scmp.eq.s32.totalorder %s24, 0
      %p296 = por %p294, %p295
      %s297 = ssub.s32 %s25, %s37
      %p298 = scmp.eq.s32.totalorder %s297, 0
      %s300 = sadd.s32 %s299, 1
      %s301 = scalar_select %p298, %s299, %s300
      %p304 = pneg %p298
      %p305 = scmp.eq.s32.totalorder %s18, 3
      %p306 = por %p304, %p305
      %p307 = scmp.ne.s32.totalorder %s299, %s302
      %p308 = scmp.eq.s32.totalorder %s18, 0
      %p309 = por %p307, %p308
      %p310 = scmp.ne.s32.totalorder %s299, %s302
      %p311 = scmp.eq.s32.totalorder %s23, 3
      %p312 = por %p310, %p311
      %p313 = scmp.ne.s32.totalorder %s302, %s303
      %p314 = scmp.eq.s32.totalorder %s23, 0
      %p315 = por %p313, %p314
      %p316 = scmp.ne.s32.totalorder %s302, %s303
      %p317 = scmp.eq.s32.totalorder %s24, 3
      %p318 = por %p316, %p317
      %p320 = scmp.ne.s32.totalorder %s303, %s319
      %p321 = scmp.eq.s32.totalorder %s24, 0
      %p322 = por %p320, %p321
      %p323 = scmp.le.s32.totalorder 1, %s18
      %p324 = scmp.lt.s32.totalorder %s18, 5
      %p325 = pnand %p323, %p324
      %p326 = pneg %p325
      // Predicated region
      $region9: #{tpu_custom_call.1} parent=5 // pred_check
        _
      $region10: #{tpu_custom_call.1} parent=5 // pred_check_branch
        %328 = sbr.rel (%p325) target = $region12
      $region11: #{tpu_custom_call.1} parent=5 // pred_region
        %s329 = ssub.s32 %s18, 1
        // Predicated region
        $region13: #{tpu_custom_call.1} parent=11 // pred_check
          %p330 = pneg %p79
        $region14: #{tpu_custom_call.1} parent=11 // pred_check_branch
          %332 = sbr.rel (%p330) target = $region16
        $region15: #{tpu_custom_call.1} parent=11 // pred_region
          _
        $region16: #{tpu_custom_call.1} parent=11 // pred_fallthru
          _
        // Predicated region
        $region17: #{tpu_custom_call.1} parent=11 // pred_check
          %p333 = pneg %p100
        $region18: #{tpu_custom_call.1} parent=11 // pred_check_branch
          %335 = sbr.rel (%p333) target = $region20
        $region19: #{tpu_custom_call.1} parent=11 // pred_region
          _
        $region20: #{tpu_custom_call.1} parent=11 // pred_fallthru
          _
        // Predicated region
        $region21: #{tpu_custom_call.1} parent=11 // pred_check
          %p336 = pneg %p121
        $region22: #{tpu_custom_call.1} parent=11 // pred_check_branch
          %338 = sbr.rel (%p336) target = $region24
        $region23: #{tpu_custom_call.1} parent=11 // pred_region
          _
        $region24: #{tpu_custom_call.1} parent=11 // pred_fallthru
          _
        // Predicated region
        $region25: #{tpu_custom_call.1} parent=11 // pred_check
          %p339 = pneg %p142
        $region26: #{tpu_custom_call.1} parent=11 // pred_check_branch
          %341 = sbr.rel (%p339) target = $region28
        $region27: #{tpu_custom_call.1} parent=11 // pred_region
          _
        $region28: #{tpu_custom_call.1} parent=11 // pred_fallthru
          _
        // Predicated region
        $region29: #{tpu_custom_call.1} parent=11 // pred_check
          %p342 = pneg %p163
        $region30: #{tpu_custom_call.1} parent=11 // pred_check_branch
          %344 = sbr.rel (%p342) target = $region32
        $region31: #{tpu_custom_call.1} parent=11 // pred_region
          _
        $region32: #{tpu_custom_call.1} parent=11 // pred_fallthru
          _
        // Predicated region
        $region33: #{tpu_custom_call.1} parent=11 // pred_check
          %p345 = pneg %p184
        $region34: #{tpu_custom_call.1} parent=11 // pred_check_branch
          %347 = sbr.rel (%p345) target = $region36
        $region35: #{tpu_custom_call.1} parent=11 // pred_region
          _
        $region36: #{tpu_custom_call.1} parent=11 // pred_fallthru
          _
        // Predicated region
        $region37: #{tpu_custom_call.1} parent=11 // pred_check
          %p348 = pneg %p205
        $region38: #{tpu_custom_call.1} parent=11 // pred_check_branch
          %350 = sbr.rel (%p348) target = $region40
        $region39: #{tpu_custom_call.1} parent=11 // pred_region
          _
        $region40: #{tpu_custom_call.1} parent=11 // pred_fallthru
          _
        // Predicated region
        $region41: #{tpu_custom_call.1} parent=11 // pred_check
          %p351 = pneg %p226
        $region42: #{tpu_custom_call.1} parent=11 // pred_check_branch
          %353 = sbr.rel (%p351) target = $region44
        $region43: #{tpu_custom_call.1} parent=11 // pred_region
          _
        $region44: #{tpu_custom_call.1} parent=11 // pred_fallthru
          _
        // Predicated region
        $region45: #{tpu_custom_call.1} parent=11 // pred_check
          %p354 = pneg %p247
        $region46: #{tpu_custom_call.1} parent=11 // pred_check_branch
          %356 = sbr.rel (%p354) target = $region48
        $region47: #{tpu_custom_call.1} parent=11 // pred_region
          _
        $region48: #{tpu_custom_call.1} parent=11 // pred_fallthru
          _
        // Predicated region
        $region49: #{tpu_custom_call.1} parent=11 // pred_check
          %p357 = pneg %p268
        $region50: #{tpu_custom_call.1} parent=11 // pred_check_branch
          %359 = sbr.rel (%p357) target = $region52
        $region51: #{tpu_custom_call.1} parent=11 // pred_region
          _
        $region52: #{tpu_custom_call.1} parent=11 // pred_fallthru
          _
        // Predicated region
        $region53: #{tpu_custom_call.1} parent=11 // pred_check
          %p360 = pneg %p289
        $region54: #{tpu_custom_call.1} parent=11 // pred_check_branch
          %362 = sbr.rel (%p360) target = $region56
        $region55: #{tpu_custom_call.1} parent=11 // pred_region
          _
        $region56: #{tpu_custom_call.1} parent=11 // pred_fallthru
          _
      $region12: #{tpu_custom_call.1} parent=5 // pred_fallthru
        _
      %p363 = scmp.lt.s32.totalorder %s18, 4
      // Predicated region
      $region57: #{tpu_custom_call.1} parent=5 // pred_check
        %p364 = pneg %p363
      $region58: #{tpu_custom_call.1} parent=5 // pred_check_branch
        %366 = sbr.rel (%p364) target = $region60
      $region59: #{tpu_custom_call.1} parent=5 // pred_region
        // Predicated region
        $region61: #{tpu_custom_call.1} parent=59 // pred_check
          %p367 = pneg %p52
        $region62: #{tpu_custom_call.1} parent=59 // pred_check_branch
          %369 = sbr.rel (%p367) target = $region64
        $region63: #{tpu_custom_call.1} parent=59 // pred_region
          %s370 = sand.u32 %s42, 1
          %s371 = sand.u32 %s42, 1
          %s372 = smul.addr %s371, 64
          %s373 = scalar_lea.vmem [#allocation3], %s372
          %s374 = smul.u32 4, %s25
          %s375 = smul.u32 4, %s26
          %s376 = smul.addr %s374, 8
          %s377 = sadd.s32 %s375, %s376
          %s378 = smul.addr %s377, 4
          %s379 = scalar_lea.vmem %s0, %s378
          // Predicated region
          $region65: #{tpu_custom_call.1} parent=63 // pred_check
            _
          $region66: #{tpu_custom_call.1} parent=63 // pred_check_branch
            %381 = sbr.rel (0) target = $region68
          $region67: #{tpu_custom_call.1} parent=63 // pred_region
            // Predicated region
            $region69: #{tpu_custom_call.1} parent=67 // pred_check
              _
            $region70: #{tpu_custom_call.1} parent=67 // pred_check_branch
              %383 = sbr.rel (0) target = $region72
            $region71: #{tpu_custom_call.1} parent=67 // pred_region
              loop: start=0, step=1, limit=1
              $region73: #{tpu_custom_call.1} parent=71 // loop_pre_header
                _
              $region74: #{tpu_custom_call.1} parent=71 // loop_header
                %s385 = sphi 0, %s389
                %p386 = scmp.ge.s32.totalorder %s385, 1
                %s390 = sphi %s379, %s379
                %s391 = sphi %s373, %s373
              $region75: #{tpu_custom_call.1} parent=71 // loop_header_branch
                %388 = sbr.rel (%p386) target = $region79
              $region76: #{tpu_custom_call.1} parent=71 // loop_body
                %v392 = vld [vmem:[%s390] sm:$0xff]
                %393 = vst [vmem:[%s391] sm:$0xff] %v392
                %v394 = vld [vmem:[%s390 + $0x8] sm:$0xff]
                %395 = vst [vmem:[%s391 + $0x8] sm:$0xff] %v394
                %v396 = vld [vmem:[%s390 + $0x20] sm:$0xff]
                %397 = vst [vmem:[%s391 + $0x10] sm:$0xff] %v396
                %v398 = vld [vmem:[%s390 + $0x28] sm:$0xff]
                %399 = vst [vmem:[%s391 + $0x18] sm:$0xff] %v398
                %v400 = vld [vmem:[%s390 + $0x40] sm:$0xff]
                %401 = vst [vmem:[%s391 + $0x20] sm:$0xff] %v400
                %v402 = vld [vmem:[%s390 + $0x48] sm:$0xff]
                %403 = vst [vmem:[%s391 + $0x28] sm:$0xff] %v402
                %v404 = vld [vmem:[%s390 + $0x60] sm:$0xff]
                %405 = vst [vmem:[%s391 + $0x30] sm:$0xff] %v404
                %v406 = vld [vmem:[%s390 + $0x68] sm:$0xff]
                %407 = vst [vmem:[%s391 + $0x38] sm:$0xff] %v406
              $region77: #{tpu_custom_call.1} parent=71 // loop_footer
                %s389 = sadd.s32 1, %s385
              $region78: #{tpu_custom_call.1} parent=71 // loop_footer_branch
                %384 = sbr.rel target = $region74
              $region79: #{tpu_custom_call.1} parent=71 // loop_exit
                _
            $region72: #{tpu_custom_call.1} parent=67 // pred_fallthru
              _
            // Predicated region
            $region80: #{tpu_custom_call.1} parent=67 // pred_check
              _
            $region81: #{tpu_custom_call.1} parent=67 // pred_check_branch
              %409 = sbr.rel target = $region83
            $region82: #{tpu_custom_call.1} parent=67 // pred_region
              _
            $region83: #{tpu_custom_call.1} parent=67 // pred_fallthru
              _
          $region68: #{tpu_custom_call.1} parent=63 // pred_fallthru
            _
          %410 = vnop
        $region64: #{tpu_custom_call.1} parent=59 // pred_fallthru
          _
      $region60: #{tpu_custom_call.1} parent=5 // pred_fallthru
        _
      %p411 = scmp.le.s32.totalorder 1, %s18
      %p412 = scmp.lt.s32.totalorder %s18, 5
      %p413 = pnand %p411, %p412
      %p414 = pneg %p413
      // Predicated region
      $region84: #{tpu_custom_call.1} parent=5 // pred_check
        _
      $region85: #{tpu_custom_call.1} parent=5 // pred_check_branch
        %416 = sbr.rel (%p413) target = $region87
      $region86: #{tpu_custom_call.1} parent=5 // pred_region
        %s417 = ssub.s32 %s18, 1
        %s418 = sand.u32 %s45, 1
        %s419 = sand.u32 %s45, 1
        %s420 = smul.addr %s419, 64
        %s421 = scalar_lea.vmem [#allocation3], %s420
        // Predicated region
        $region88: #{tpu_custom_call.1} parent=86 // pred_check
          %p422 = pneg %p58
        $region89: #{tpu_custom_call.1} parent=86 // pred_check_branch
          %424 = sbr.rel (%p422) target = $region91
        $region90: #{tpu_custom_call.1} parent=86 // pred_region
          _
        $region91: #{tpu_custom_call.1} parent=86 // pred_fallthru
          _
        %s425 = sand.u32 %s45, 1
        %s426 = sand.u32 %s45, 1
        %s427 = smul.addr %s426, 64
        %s428 = scalar_lea.vmem [#allocation3], %s427
        %p429 = pneg %p58
        %p430 = pneg %p55
        %p431 = pneg %p79
        %p432 = pneg %p76
        %p433 = pneg %p100
        %p434 = pneg %p97
        %p435 = pneg %p121
        %p436 = pneg %p118
        %p437 = pneg %p142
        %p438 = pneg %p139
        %p439 = pneg %p163
        %p440 = pneg %p160
        %p441 = pneg %p184
        %p442 = pneg %p181
        %p443 = pneg %p205
        %p444 = pneg %p202
        %p445 = pneg %p226
        %p446 = pneg %p223
        %p447 = pneg %p247
        %p448 = pneg %p244
        %p449 = pneg %p268
        %p450 = pneg %p265
        %p451 = pneg %p289
        %p452 = pneg %p286
        %p453 = pneg %p315
        %p454 = pneg %p312
        %p455 = scmp.lt.s32.totalorder %s27, 1
        %s456 = scalar_select %p455, %s27, 1
        %s457 = smul.addr %s456, 3
        %s458 = smul.addr %s457, 8
        %s459 = scalar_lea.vmem %s12, %s458
        %s460 = smul.u32 4, %s27
        %s461 = smul.u32 4, %s28
        %p462 = scmp.lt.s32.totalorder %s27, 1
        %s463 = scalar_select %p462, %s27, 1
        %s464 = smul.addr %s463, 3
        %s465 = smul.addr %s464, 8
        %s466 = scalar_lea.vmem %s12, %s465
        %p468 = scmp.eq.s32.totalorder %s28, 0
        // Predicated region
        $region92: #{tpu_custom_call.1} parent=86 // pred_check
          %p469 = pneg %p468
        $region93: #{tpu_custom_call.1} parent=86 // pred_check_branch
          %471 = sbr.rel (%p469) target = $region95
        $region94: #{tpu_custom_call.1} parent=86 // pred_region
          %vm472 = vcmask 31744
          %473 = vst.msk [vmem:[#allocation2] sm:$0xff] %vm472, -inf
          %474 = vst.msk [vmem:[#allocation2 + $0x8] sm:$0xff] %vm472, -inf
          %475 = vst.msk [vmem:[#allocation2 + $0x10] sm:$0xff] %vm472, -inf
          %476 = vst.msk [vmem:[#allocation2 + $0x18] sm:$0xff] %vm472, -inf
          %477 = vst.msk [vmem:[#allocation2 + $0x20] sm:$0xff] %vm472, -inf
          %478 = vst.msk [vmem:[#allocation2 + $0x28] sm:$0xff] %vm472, -inf
          %479 = vst.msk [vmem:[#allocation2 + $0x30] sm:$0xff] %vm472, -inf
          %480 = vst.msk [vmem:[#allocation2 + $0x38] sm:$0xff] %vm472, -inf
          %481 = vst.msk [vmem:[#allocation2 + $0x40] sm:$0xff] %vm472, -inf
          %482 = vst.msk [vmem:[#allocation2 + $0x48] sm:$0xff] %vm472, -inf
          %483 = vst.msk [vmem:[#allocation2 + $0x50] sm:$0xff] %vm472, -inf
          %484 = vst.msk [vmem:[#allocation2 + $0x58] sm:$0xff] %vm472, -inf
          %485 = vst.msk [vmem:[#allocation2 + $0x60] sm:$0xff] %vm472, -inf
          %486 = vst.msk [vmem:[#allocation2 + $0x68] sm:$0xff] %vm472, -inf
          %487 = vst.msk [vmem:[#allocation2 + $0x70] sm:$0xff] %vm472, -inf
          %488 = vst.msk [vmem:[#allocation2 + $0x78] sm:$0xff] %vm472, -inf
        $region95: #{tpu_custom_call.1} parent=86 // pred_fallthru
          _
        %v489 = vld [vmem:[%s1] sm:$0xff]
        %v490 = vld [vmem:[%s1 + $0x8] sm:$0xff]
        %v491 = vld [vmem:[%s1 + $0x10] sm:$0xff]
        %v492 = vld [vmem:[%s1 + $0x18] sm:$0xff]
        %v493 = vld [vmem:[%s1 + $0x20] sm:$0xff]
        %v494 = vld [vmem:[%s1 + $0x28] sm:$0xff]
        %v495 = vld [vmem:[%s1 + $0x30] sm:$0xff]
        %v496 = vld [vmem:[%s1 + $0x38] sm:$0xff]
        %v497 = vld [vmem:[%s2] sm:$0xf]
        %v498 = vld [vmem:[%s2 + $0x4] sm:$0xf]
        %v499 = vld [vmem:[%s2 + $0x8] sm:$0xf]
        %v500 = vld [vmem:[%s2 + $0xc] sm:$0xf]
        %v501 = vld [vmem:[%s2 + $0x10] sm:$0xf]
        %v502 = vld [vmem:[%s2 + $0x14] sm:$0xf]
        %v503 = vld [vmem:[%s2 + $0x18] sm:$0xf]
        %v504 = vld [vmem:[%s2 + $0x1c] sm:$0xf]
        %v505 = vld [vmem:[%s2 + $0x20] sm:$0xf]
        %v506 = vld [vmem:[%s2 + $0x24] sm:$0xf]
        %v507 = vld [vmem:[%s2 + $0x28] sm:$0xf]
        %v508 = vld [vmem:[%s2 + $0x2c] sm:$0xf]
        %v509 = vld [vmem:[%s2 + $0x30] sm:$0xf]
        %v510 = vld [vmem:[%s2 + $0x34] sm:$0xf]
        %v511 = vld [vmem:[%s2 + $0x38] sm:$0xf]
        %v512 = vld [vmem:[%s2 + $0x3c] sm:$0xf]
        %v513 = vld [vmem:[%s3] sm:$0xff]
        %v514 = vld [vmem:[%s3 + $0x8] sm:$0xff]
        %v515 = vld [vmem:[%s3 + $0x10] sm:$0xff]
        %v516 = vld [vmem:[%s3 + $0x18] sm:$0xff]
        %v517 = vld [vmem:[%s3 + $0x20] sm:$0xff]
        %v518 = vld [vmem:[%s3 + $0x28] sm:$0xff]
        %v519 = vld [vmem:[%s3 + $0x30] sm:$0xff]
        %v520 = vld [vmem:[%s3 + $0x38] sm:$0xff]
        %v521 = vld [vmem:[%s3 + $0x40] sm:$0xff]
        %v522 = vld [vmem:[%s3 + $0x48] sm:$0xff]
        %v523 = vld [vmem:[%s3 + $0x50] sm:$0xff]
        %v524 = vld [vmem:[%s3 + $0x58] sm:$0xff]
        %v525 = vld [vmem:[%s3 + $0x60] sm:$0xff]
        %v526 = vld [vmem:[%s3 + $0x68] sm:$0xff]
        %v527 = vld [vmem:[%s3 + $0x70] sm:$0xff]
        %v528 = vld [vmem:[%s3 + $0x78] sm:$0xff]
        %530 = vset.pattern.permute.xlu0 0
        %531 = vperm.xlu0 %530, %v513
        %v532 = vpop.permute.xlu0 %531
        %535 = vset.pattern.permute.xlu0 0
        %536 = vperm.xlu0 %535, %v514
        %v537 = vpop.permute.xlu0 %536
        %540 = vset.pattern.permute.xlu0 0
        %541 = vperm.xlu0 %540, %v515
        %v542 = vpop.permute.xlu0 %541
        %545 = vset.pattern.permute.xlu0 0
        %546 = vperm.xlu0 %545, %v516
        %v547 = vpop.permute.xlu0 %546
        %550 = vset.pattern.permute.xlu0 0
        %551 = vperm.xlu0 %550, %v517
        %v552 = vpop.permute.xlu0 %551
        %555 = vset.pattern.permute.xlu0 0
        %556 = vperm.xlu0 %555, %v518
        %v557 = vpop.permute.xlu0 %556
        %560 = vset.pattern.permute.xlu0 0
        %561 = vperm.xlu0 %560, %v519
        %v562 = vpop.permute.xlu0 %561
        %565 = vset.pattern.permute.xlu0 0
        %566 = vperm.xlu0 %565, %v520
        %v567 = vpop.permute.xlu0 %566
        %570 = vset.pattern.permute.xlu0 0
        %571 = vperm.xlu0 %570, %v521
        %v572 = vpop.permute.xlu0 %571
        %575 = vset.pattern.permute.xlu0 0
        %576 = vperm.xlu0 %575, %v522
        %v577 = vpop.permute.xlu0 %576
        %580 = vset.pattern.permute.xlu0 0
        %581 = vperm.xlu0 %580, %v523
        %v582 = vpop.permute.xlu0 %581
        %585 = vset.pattern.permute.xlu0 0
        %586 = vperm.xlu0 %585, %v524
        %v587 = vpop.permute.xlu0 %586
        %590 = vset.pattern.permute.xlu0 0
        %591 = vperm.xlu0 %590, %v525
        %v592 = vpop.permute.xlu0 %591
        %595 = vset.pattern.permute.xlu0 0
        %596 = vperm.xlu0 %595, %v526
        %v597 = vpop.permute.xlu0 %596
        %600 = vset.pattern.permute.xlu0 0
        %601 = vperm.xlu0 %600, %v527
        %v602 = vpop.permute.xlu0 %601
        %605 = vset.pattern.permute.xlu0 0
        %606 = vperm.xlu0 %605, %v528
        %v607 = vpop.permute.xlu0 %606
        %v609 = vlaneseq
        %v610 = vand.u32 %v609, 127
        loop: start=0, step=1, limit=4
        $region96: #{tpu_custom_call.1} parent=86 // loop_pre_header
          _
        $region97: #{tpu_custom_call.1} parent=86 // loop_header
          %s612 = sphi 0, %s616
          %p613 = scmp.ge.s32.totalorder %s612, 4
        $region98: #{tpu_custom_call.1} parent=86 // loop_header_branch
          %615 = sbr.rel (%p613) target = $region102
        $region99: #{tpu_custom_call.1} parent=86 // loop_body
          %s617 = smul.u32 %s612, 4
          %s618 = smul.addr %s617, 4
          %s619 = scalar_lea.vmem %s421, %s618 [#allocation3]
          %v620 = vld [vmem:[%s619] sm:$0xff]
          %v621 = vld [vmem:[%s619 + $0x8] sm:$0xff]
          %v624 = vcombine.high %v620, %v620
          %v625 = vcombine.high %v621, %v621
          %vm626 = vcmask 31744
          %v628 = vsel %vm626, %v489, 0
          %v631 = vsel %vm626, %v490, 0
          %v634 = vsel %vm626, %v491, 0
          %v637 = vsel %vm626, %v492, 0
          %v640 = vsel %vm626, %v493, 0
          %v643 = vsel %vm626, %v494, 0
          %v646 = vsel %vm626, %v495, 0
          %v649 = vsel %vm626, %v496, 0
          %vm651 = vcmask 1043456
          %v652 = vsel %vm651, %v620, 0
          %v654 = vsel %vm651, %v624, 0
          %v656 = vsel %vm651, %v621, 0
          %v658 = vsel %vm651, %v625, 0
          %660 = vmatprep.subr.mxu0 %v654
          %661 = vmatpush1.msra.mxu0 %v652
          %662 = vmatprep.subr.mxu0 0.0
          %663 = vmatpush1.msra.mxu0 0.0
          %664 = vmatprep.subr.mxu0 0.0
          %665 = vmatpush1.msra.mxu0 0.0
          %666 = vmatprep.subr.mxu0 0.0
          %667 = vmatpush1.msra.mxu0 0.0
          %668 = vmatprep.subr.mxu0 0.0
          %669 = vmatpush1.msra.mxu0 0.0
          %670 = vmatprep.subr.mxu0 0.0
          %671 = vmatpush1.msra.mxu0 0.0
          %672 = vmatprep.subr.mxu0 0.0
          %673 = vmatpush1.msra.mxu0 0.0
          %674 = vmatprep.subr.mxu0 0.0
          %675 = vmatpush1.msra.mxu0 0.0
          %676 = vmatprep.subr.mxu0 0.0
          %677 = vmatpush1.msra.mxu0 0.0
          %678 = vmatprep.subr.mxu0 0.0
          %679 = vmatpush1.msra.mxu0 0.0
          %680 = vmatprep.subr.mxu0 0.0
          %681 = vmatpush1.msra.mxu0 0.0
          %682 = vmatprep.subr.mxu0 0.0
          %683 = vmatpush1.msra.mxu0 0.0
          %684 = vmatprep.subr.mxu0 0.0
          %685 = vmatpush1.msra.mxu0 0.0
          %686 = vmatprep.subr.mxu0 0.0
          %687 = vmatpush1.msra.mxu0 0.0
          %688 = vmatprep.subr.mxu0 0.0
          %689 = vmatpush1.msra.mxu0 0.0
          %690 = vmatprep.subr.mxu0 0.0
          %691 = vmatpush1.msra.mxu0 0.0
          %692 = vmatprep.subr.mxu0 0.0
          %693 = vmatpush1.msra.mxu0 0.0
          %694 = vmatprep.subr.mxu0 0.0
          %695 = vmatpush1.msra.mxu0 0.0
          %696 = vmatprep.subr.mxu0 0.0
          %697 = vmatpush1.msra.mxu0 0.0
          %698 = vmatprep.subr.mxu0 0.0
          %699 = vmatpush1.msra.mxu0 0.0
          %700 = vmatprep.subr.mxu0 0.0
          %701 = vmatpush1.msra.mxu0 0.0
          %702 = vmatprep.subr.mxu0 0.0
          %703 = vmatpush1.msra.mxu0 0.0
          %704 = vmatprep.subr.mxu0 0.0
          %705 = vmatpush1.msra.mxu0 0.0
          %706 = vmatprep.subr.mxu0 0.0
          %707 = vmatpush1.msra.mxu0 0.0
          %708 = vmatprep.subr.mxu0 0.0
          %709 = vmatpush1.msra.mxu0 0.0
          %710 = vmatprep.subr.mxu0 0.0
          %711 = vmatpush1.msra.mxu0 0.0
          %712 = vmatprep.subr.mxu0 0.0
          %713 = vmatpush1.msra.mxu0 0.0
          %714 = vmatprep.subr.mxu0 0.0
          %715 = vmatpush1.msra.mxu0 0.0
          %716 = vmatprep.subr.mxu0 0.0
          %717 = vmatpush1.msra.mxu0 0.0
          %718 = vmatprep.subr.mxu0 0.0
          %719 = vmatpush1.msra.mxu0 0.0
          %720 = vmatprep.subr.mxu0 0.0
          %721 = vmatpush1.msra.mxu0 0.0
          %722 = vmatprep.subr.mxu0 0.0
          %723 = vmatpush1.msra.mxu0 0.0
          %724 = vmatprep.mubr.f32.mxu0 0.0
          %725 = vmatmul.mubr.f32.gmra.mrb[0].mxu0 %v628
          %v726 = vpop.f32.mrb[0].mxu0
          %v727 = vadd.f32 0.0, %v726
          %v728 = vpop.f32.mrb[0].mxu0
          %v729 = vadd.f32 0.0, %v728
          %730 = vmatprep.mubr.f32.mxu0 0.0
          %731 = vmatmul.mubr.f32.gmra.mrb[0].mxu0 %v631
          %v732 = vpop.f32.mrb[0].mxu0
          %v733 = vadd.f32 0.0, %v732
          %v734 = vpop.f32.mrb[0].mxu0
          %v735 = vadd.f32 0.0, %v734
          %736 = vmatprep.mubr.f32.mxu0 0.0
          %737 = vmatmul.mubr.f32.gmra.mrb[0].mxu0 %v634
          %v738 = vpop.f32.mrb[0].mxu0
          %v739 = vadd.f32 0.0, %v738
          %v740 = vpop.f32.mrb[0].mxu0
          %v741 = vadd.f32 0.0, %v740
          %742 = vmatprep.mubr.f32.mxu0 0.0
          %743 = vmatmul.mubr.f32.gmra.mrb[0].mxu0 %v637
          %v744 = vpop.f32.mrb[0].mxu0
          %v745 = vadd.f32 0.0, %v744
          %v746 = vpop.f32.mrb[0].mxu0
          %v747 = vadd.f32 0.0, %v746
          %748 = vmatprep.mubr.f32.mxu0 0.0
          %749 = vmatmul.mubr.f32.gmra.mrb[0].mxu0 %v640
          %v750 = vpop.f32.mrb[0].mxu0
          %v751 = vadd.f32 0.0, %v750
          %v752 = vpop.f32.mrb[0].mxu0
          %v753 = vadd.f32 0.0, %v752
          %754 = vmatprep.mubr.f32.mxu0 0.0
          %755 = vmatmul.mubr.f32.gmra.mrb[0].mxu0 %v643
          %v756 = vpop.f32.mrb[0].mxu0
          %v757 = vadd.f32 0.0, %v756
          %v758 = vpop.f32.mrb[0].mxu0
          %v759 = vadd.f32 0.0, %v758
          %760 = vmatprep.mubr.f32.mxu0 0.0
          %761 = vmatmul.mubr.f32.gmra.mrb[0].mxu0 %v646
          %v762 = vpop.f32.mrb[0].mxu0
          %v763 = vadd.f32 0.0, %v762
          %v764 = vpop.f32.mrb[0].mxu0
          %v765 = vadd.f32 0.0, %v764
          %766 = vmatprep.mubr.f32.mxu0 0.0
          %767 = vmatmul.mubr.f32.gmra.mrb[0].mxu0 %v649
          %v768 = vpop.f32.mrb[0].mxu0
          %v769 = vadd.f32 0.0, %v768
          %v770 = vpop.f32.mrb[0].mxu0
          %v771 = vadd.f32 0.0, %v770
          %772 = vdwg.mxu0
          %773 = vmatprep.subr.mxu0 %v658
          %774 = vmatpush1.msra.mxu0 %v656
          %775 = vmatprep.subr.mxu0 0.0
          %776 = vmatpush1.msra.mxu0 0.0
          %777 = vmatprep.subr.mxu0 0.0
          %778 = vmatpush1.msra.mxu0 0.0
          %779 = vmatprep.subr.mxu0 0.0
          %780 = vmatpush1.msra.mxu0 0.0
          %781 = vmatprep.subr.mxu0 0.0
          %782 = vmatpush1.msra.mxu0 0.0
          %783 = vmatprep.subr.mxu0 0.0
          %784 = vmatpush1.msra.mxu0 0.0
          %785 = vmatprep.subr.mxu0 0.0
          %786 = vmatpush1.msra.mxu0 0.0
          %787 = vmatprep.subr.mxu0 0.0
          %788 = vmatpush1.msra.mxu0 0.0
          %789 = vmatprep.subr.mxu0 0.0
          %790 = vmatpush1.msra.mxu0 0.0
          %791 = vmatprep.subr.mxu0 0.0
          %792 = vmatpush1.msra.mxu0 0.0
          %793 = vmatprep.subr.mxu0 0.0
          %794 = vmatpush1.msra.mxu0 0.0
          %795 = vmatprep.subr.mxu0 0.0
          %796 = vmatpush1.msra.mxu0 0.0
          %797 = vmatprep.subr.mxu0 0.0
          %798 = vmatpush1.msra.mxu0 0.0
          %799 = vmatprep.subr.mxu0 0.0
          %800 = vmatpush1.msra.mxu0 0.0
          %801 = vmatprep.subr.mxu0 0.0
          %802 = vmatpush1.msra.mxu0 0.0
          %803 = vmatprep.subr.mxu0 0.0
          %804 = vmatpush1.msra.mxu0 0.0
          %805 = vmatprep.subr.mxu0 0.0
          %806 = vmatpush1.msra.mxu0 0.0
          %807 = vmatprep.subr.mxu0 0.0
          %808 = vmatpush1.msra.mxu0 0.0
          %809 = vmatprep.subr.mxu0 0.0
          %810 = vmatpush1.msra.mxu0 0.0
          %811 = vmatprep.subr.mxu0 0.0
          %812 = vmatpush1.msra.mxu0 0.0
          %813 = vmatprep.subr.mxu0 0.0
          %814 = vmatpush1.msra.mxu0 0.0
          %815 = vmatprep.subr.mxu0 0.0
          %816 = vmatpush1.msra.mxu0 0.0
          %817 = vmatprep.subr.mxu0 0.0
          %818 = vmatpush1.msra.mxu0 0.0
          %819 = vmatprep.subr.mxu0 0.0
          %820 = vmatpush1.msra.mxu0 0.0
          %821 = vmatprep.subr.mxu0 0.0
          %822 = vmatpush1.msra.mxu0 0.0
          %823 = vmatprep.subr.mxu0 0.0
          %824 = vmatpush1.msra.mxu0 0.0
          %825 = vmatprep.subr.mxu0 0.0
          %826 = vmatpush1.msra.mxu0 0.0
          %827 = vmatprep.subr.mxu0 0.0
          %828 = vmatpush1.msra.mxu0 0.0
          %829 = vmatprep.subr.mxu0 0.0
          %830 = vmatpush1.msra.mxu0 0.0
          %831 = vmatprep.subr.mxu0 0.0
          %832 = vmatpush1.msra.mxu0 0.0
          %833 = vmatprep.subr.mxu0 0.0
          %834 = vmatpush1.msra.mxu0 0.0
          %835 = vmatprep.subr.mxu0 0.0
          %836 = vmatpush1.msra.mxu0 0.0
          %837 = vmatprep.mubr.f32.mxu0 0.0
          %838 = vmatmul.mubr.f32.gmra.mrb[0].mxu0 %v628
          %v839 = vpop.f32.mrb[0].mxu0
          %v840 = vadd.f32 0.0, %v839
          %v841 = vpop.f32.mrb[0].mxu0
          %v842 = vadd.f32 0.0, %v841
          %843 = vmatprep.mubr.f32.mxu0 0.0
          %844 = vmatmul.mubr.f32.gmra.mrb[0].mxu0 %v631
          %v845 = vpop.f32.mrb[0].mxu0
          %v846 = vadd.f32 0.0, %v845
          %v847 = vpop.f32.mrb[0].mxu0
          %v848 = vadd.f32 0.0, %v847
          %849 = vmatprep.mubr.f32.mxu0 0.0
          %850 = vmatmul.mubr.f32.gmra.mrb[0].mxu0 %v634
          %v851 = vpop.f32.mrb[0].mxu0
          %v852 = vadd.f32 0.0, %v851
          %v853 = vpop.f32.mrb[0].mxu0
          %v854 = vadd.f32 0.0, %v853
          %855 = vmatprep.mubr.f32.mxu0 0.0
          %856 = vmatmul.mubr.f32.gmra.mrb[0].mxu0 %v637
          %v857 = vpop.f32.mrb[0].mxu0
          %v858 = vadd.f32 0.0, %v857
          %v859 = vpop.f32.mrb[0].mxu0
          %v860 = vadd.f32 0.0, %v859
          %861 = vmatprep.mubr.f32.mxu0 0.0
          %862 = vmatmul.mubr.f32.gmra.mrb[0].mxu0 %v640
          %v863 = vpop.f32.mrb[0].mxu0
          %v864 = vadd.f32 0.0, %v863
          %v865 = vpop.f32.mrb[0].mxu0
          %v866 = vadd.f32 0.0, %v865
          %867 = vmatprep.mubr.f32.mxu0 0.0
          %868 = vmatmul.mubr.f32.gmra.mrb[0].mxu0 %v643
          %v869 = vpop.f32.mrb[0].mxu0
          %v870 = vadd.f32 0.0, %v869
          %v871 = vpop.f32.mrb[0].mxu0
          %v872 = vadd.f32 0.0, %v871
          %873 = vmatprep.mubr.f32.mxu0 0.0
          %874 = vmatmul.mubr.f32.gmra.mrb[0].mxu0 %v646
          %v875 = vpop.f32.mrb[0].mxu0
          %v876 = vadd.f32 0.0, %v875
          %v877 = vpop.f32.mrb[0].mxu0
          %v878 = vadd.f32 0.0, %v877
          %879 = vmatprep.mubr.f32.mxu0 0.0
          %880 = vmatmul.mubr.f32.gmra.mrb[0].mxu0 %v649
          %v881 = vpop.f32.mrb[0].mxu0
          %v882 = vadd.f32 0.0, %v881
          %v883 = vpop.f32.mrb[0].mxu0
          %v884 = vadd.f32 0.0, %v883
          %885 = vdwg.mxu0
          %v886 = vmax.f32 %v727, 0.0
          %v887 = vmax.f32 %v729, 0.0
          %v888 = vmax.f32 %v840, 0.0
          %v889 = vmax.f32 %v842, 0.0
          %v890 = vmax.f32 %v733, 0.0
          %v891 = vmax.f32 %v735, 0.0
          %v892 = vmax.f32 %v846, 0.0
          %v893 = vmax.f32 %v848, 0.0
          %v894 = vmax.f32 %v739, 0.0
          %v895 = vmax.f32 %v741, 0.0
          %v896 = vmax.f32 %v852, 0.0
          %v897 = vmax.f32 %v854, 0.0
          %v898 = vmax.f32 %v745, 0.0
          %v899 = vmax.f32 %v747, 0.0
          %v900 = vmax.f32 %v858, 0.0
          %v901 = vmax.f32 %v860, 0.0
          %v902 = vmax.f32 %v751, 0.0
          %v903 = vmax.f32 %v753, 0.0
          %v904 = vmax.f32 %v864, 0.0
          %v905 = vmax.f32 %v866, 0.0
          %v906 = vmax.f32 %v757, 0.0
          %v907 = vmax.f32 %v759, 0.0
          %v908 = vmax.f32 %v870, 0.0
          %v909 = vmax.f32 %v872, 0.0
          %v910 = vmax.f32 %v763, 0.0
          %v911 = vmax.f32 %v765, 0.0
          %v912 = vmax.f32 %v876, 0.0
          %v913 = vmax.f32 %v878, 0.0
          %v914 = vmax.f32 %v769, 0.0
          %v915 = vmax.f32 %v771, 0.0
          %v916 = vmax.f32 %v882, 0.0
          %v917 = vmax.f32 %v884, 0.0
          %v918 = vpack.c.bf16 %v890, %v886
          %v919 = vpack.c.bf16 %v891, %v887
          %v920 = vpack.c.bf16 %v892, %v888
          %v921 = vpack.c.bf16 %v893, %v889
          %v922 = vpack.c.bf16 %v898, %v894
          %v923 = vpack.c.bf16 %v899, %v895
          %v924 = vpack.c.bf16 %v900, %v896
          %v925 = vpack.c.bf16 %v901, %v897
          %v926 = vpack.c.bf16 %v906, %v902
          %v927 = vpack.c.bf16 %v907, %v903
          %v928 = vpack.c.bf16 %v908, %v904
          %v929 = vpack.c.bf16 %v909, %v905
          %v930 = vpack.c.bf16 %v914, %v910
          %v931 = vpack.c.bf16 %v915, %v911
          %v932 = vpack.c.bf16 %v916, %v912
          %v933 = vpack.c.bf16 %v917, %v913
          %v950 = vunpack.c.l.b16 %v497
          %v951 = vunpack.c.l.b16 %v498
          %v952 = vunpack.c.l.b16 %v499
          %v953 = vunpack.c.l.b16 %v500
          %v954 = vunpack.c.l.b16 %v501
          %v955 = vunpack.c.l.b16 %v502
          %v956 = vunpack.c.l.b16 %v503
          %v957 = vunpack.c.l.b16 %v504
          %v958 = vunpack.c.l.b16 %v505
          %v959 = vunpack.c.l.b16 %v506
          %v960 = vunpack.c.l.b16 %v507
          %v961 = vunpack.c.l.b16 %v508
          %v962 = vunpack.c.l.b16 %v509
          %v963 = vunpack.c.l.b16 %v510
          %v964 = vunpack.c.l.b16 %v511
          %v965 = vunpack.c.l.b16 %v512
          %v966 = vpack.c.b16 %v951, %v950
          %v967 = vpack.c.b16 %v953, %v952
          %v968 = vpack.c.b16 %v955, %v954
          %v969 = vpack.c.b16 %v957, %v956
          %v970 = vpack.c.b16 %v959, %v958
          %v971 = vpack.c.b16 %v961, %v960
          %v972 = vpack.c.b16 %v963, %v962
          %v973 = vpack.c.b16 %v965, %v964
          %vm974 = vcmask 523264
          %v976 = vsel %vm974, %v966, 0
          %v979 = vsel %vm974, %v967, 0
          %v982 = vsel %vm974, %v968, 0
          %v985 = vsel %vm974, %v969, 0
          %v988 = vsel %vm974, %v970, 0
          %v991 = vsel %vm974, %v971, 0
          %v994 = vsel %vm974, %v972, 0
          %v997 = vsel %vm974, %v973, 0
          %999 = vmatprep.subr.bf16.mxu0 %v919
          %1000 = vmatpush1.bf16.msra.mxu0 %v918
          %1001 = vmatprep.subr.bf16.mxu0 %v923
          %1002 = vmatpush1.bf16.msra.mxu0 %v922
          %1003 = vmatprep.subr.bf16.mxu0 %v927
          %1004 = vmatpush1.bf16.msra.mxu0 %v926
          %1005 = vmatprep.subr.bf16.mxu0 %v931
          %1006 = vmatpush1.bf16.msra.mxu0 %v930
          %1007 = vmatprep.subr.bf16.mxu0 0
          %1008 = vmatpush1.bf16.msra.mxu0 0
          %1009 = vmatprep.subr.bf16.mxu0 0
          %1010 = vmatpush1.bf16.msra.mxu0 0
          %1011 = vmatprep.subr.bf16.mxu0 0
          %1012 = vmatpush1.bf16.msra.mxu0 0
          %1013 = vmatprep.subr.bf16.mxu0 0
          %1014 = vmatpush1.bf16.msra.mxu0 0
          %1015 = vmatprep.subr.bf16.mxu0 0
          %1016 = vmatpush1.bf16.msra.mxu0 0
          %1017 = vmatprep.subr.bf16.mxu0 0
          %1018 = vmatpush1.bf16.msra.mxu0 0
          %1019 = vmatprep.subr.bf16.mxu0 0
          %1020 = vmatpush1.bf16.msra.mxu0 0
          %1021 = vmatprep.subr.bf16.mxu0 0
          %1022 = vmatpush1.bf16.msra.mxu0 0
          %1023 = vmatprep.subr.bf16.mxu0 0
          %1024 = vmatpush1.bf16.msra.mxu0 0
          %1025 = vmatprep.subr.bf16.mxu0 0
          %1026 = vmatpush1.bf16.msra.mxu0 0
          %1027 = vmatprep.subr.bf16.mxu0 0
          %1028 = vmatpush1.bf16.msra.mxu0 0
          %1029 = vmatprep.subr.bf16.mxu0 0
          %1030 = vmatpush1.bf16.msra.mxu0 0
          %1031 = vmatprep.mubr.bf16.mxu0 0
          %1032 = vmatmul.mubr.bf16.gmra.mrb[0].mxu0 %v976
          %v1033 = vpop.f32.mrb[0].mxu0
          %v1034 = vadd.f32 %v532, %v1033
          %v1035 = vpop.f32.mrb[0].mxu0
          %v1036 = vadd.f32 %v532, %v1035
          %v1037 = vpop.f32.mrb[0].mxu0
          %v1038 = vadd.f32 %v537, %v1037
          %v1039 = vpop.f32.mrb[0].mxu0
          %v1040 = vadd.f32 %v537, %v1039
          %1041 = vmatprep.mubr.bf16.mxu0 0
          %1042 = vmatmul.mubr.bf16.gmra.mrb[0].mxu0 %v979
          %v1043 = vpop.f32.mrb[0].mxu0
          %v1044 = vadd.f32 %v542, %v1043
          %v1045 = vpop.f32.mrb[0].mxu0
          %v1046 = vadd.f32 %v542, %v1045
          %v1047 = vpop.f32.mrb[0].mxu0
          %v1048 = vadd.f32 %v547, %v1047
          %v1049 = vpop.f32.mrb[0].mxu0
          %v1050 = vadd.f32 %v547, %v1049
          %1051 = vmatprep.mubr.bf16.mxu0 0
          %1052 = vmatmul.mubr.bf16.gmra.mrb[0].mxu0 %v982
          %v1053 = vpop.f32.mrb[0].mxu0
          %v1054 = vadd.f32 %v552, %v1053
          %v1055 = vpop.f32.mrb[0].mxu0
          %v1056 = vadd.f32 %v552, %v1055
          %v1057 = vpop.f32.mrb[0].mxu0
          %v1058 = vadd.f32 %v557, %v1057
          %v1059 = vpop.f32.mrb[0].mxu0
          %v1060 = vadd.f32 %v557, %v1059
          %1061 = vmatprep.mubr.bf16.mxu0 0
          %1062 = vmatmul.mubr.bf16.gmra.mrb[0].mxu0 %v985
          %v1063 = vpop.f32.mrb[0].mxu0
          %v1064 = vadd.f32 %v562, %v1063
          %v1065 = vpop.f32.mrb[0].mxu0
          %v1066 = vadd.f32 %v562, %v1065
          %v1067 = vpop.f32.mrb[0].mxu0
          %v1068 = vadd.f32 %v567, %v1067
          %v1069 = vpop.f32.mrb[0].mxu0
          %v1070 = vadd.f32 %v567, %v1069
          %1071 = vmatprep.mubr.bf16.mxu0 0
          %1072 = vmatmul.mubr.bf16.gmra.mrb[0].mxu0 %v988
          %v1073 = vpop.f32.mrb[0].mxu0
          %v1074 = vadd.f32 %v572, %v1073
          %v1075 = vpop.f32.mrb[0].mxu0
          %v1076 = vadd.f32 %v572, %v1075
          %v1077 = vpop.f32.mrb[0].mxu0
          %v1078 = vadd.f32 %v577, %v1077
          %v1079 = vpop.f32.mrb[0].mxu0
          %v1080 = vadd.f32 %v577, %v1079
          %1081 = vmatprep.mubr.bf16.mxu0 0
          %1082 = vmatmul.mubr.bf16.gmra.mrb[0].mxu0 %v991
          %v1083 = vpop.f32.mrb[0].mxu0
          %v1084 = vadd.f32 %v582, %v1083
          %v1085 = vpop.f32.mrb[0].mxu0
          %v1086 = vadd.f32 %v582, %v1085
          %v1087 = vpop.f32.mrb[0].mxu0
          %v1088 = vadd.f32 %v587, %v1087
          %v1089 = vpop.f32.mrb[0].mxu0
          %v1090 = vadd.f32 %v587, %v1089
          %1091 = vmatprep.mubr.bf16.mxu0 0
          %1092 = vmatmul.mubr.bf16.gmra.mrb[0].mxu0 %v994
          %v1093 = vpop.f32.mrb[0].mxu0
          %v1094 = vadd.f32 %v592, %v1093
          %v1095 = vpop.f32.mrb[0].mxu0
          %v1096 = vadd.f32 %v592, %v1095
          %v1097 = vpop.f32.mrb[0].mxu0
          %v1098 = vadd.f32 %v597, %v1097
          %v1099 = vpop.f32.mrb[0].mxu0
          %v1100 = vadd.f32 %v597, %v1099
          %1101 = vmatprep.mubr.bf16.mxu0 0
          %1102 = vmatmul.mubr.bf16.gmra.mrb[0].mxu0 %v997
          %v1103 = vpop.f32.mrb[0].mxu0
          %v1104 = vadd.f32 %v602, %v1103
          %v1105 = vpop.f32.mrb[0].mxu0
          %v1106 = vadd.f32 %v602, %v1105
          %v1107 = vpop.f32.mrb[0].mxu0
          %v1108 = vadd.f32 %v607, %v1107
          %v1109 = vpop.f32.mrb[0].mxu0
          %v1110 = vadd.f32 %v607, %v1109
          %1111 = vdwg.mxu0
          %1112 = vmatprep.subr.bf16.mxu0 %v921
          %1113 = vmatpush1.bf16.msra.mxu0 %v920
          %1114 = vmatprep.subr.bf16.mxu0 %v925
          %1115 = vmatpush1.bf16.msra.mxu0 %v924
          %1116 = vmatprep.subr.bf16.mxu0 %v929
          %1117 = vmatpush1.bf16.msra.mxu0 %v928
          %1118 = vmatprep.subr.bf16.mxu0 %v933
          %1119 = vmatpush1.bf16.msra.mxu0 %v932
          %1120 = vmatprep.subr.bf16.mxu0 0
          %1121 = vmatpush1.bf16.msra.mxu0 0
          %1122 = vmatprep.subr.bf16.mxu0 0
          %1123 = vmatpush1.bf16.msra.mxu0 0
          %1124 = vmatprep.subr.bf16.mxu0 0
          %1125 = vmatpush1.bf16.msra.mxu0 0
          %1126 = vmatprep.subr.bf16.mxu0 0
          %1127 = vmatpush1.bf16.msra.mxu0 0
          %1128 = vmatprep.subr.bf16.mxu0 0
          %1129 = vmatpush1.bf16.msra.mxu0 0
          %1130 = vmatprep.subr.bf16.mxu0 0
          %1131 = vmatpush1.bf16.msra.mxu0 0
          %1132 = vmatprep.subr.bf16.mxu0 0
          %1133 = vmatpush1.bf16.msra.mxu0 0
          %1134 = vmatprep.subr.bf16.mxu0 0
          %1135 = vmatpush1.bf16.msra.mxu0 0
          %1136 = vmatprep.subr.bf16.mxu0 0
          %1137 = vmatpush1.bf16.msra.mxu0 0
          %1138 = vmatprep.subr.bf16.mxu0 0
          %1139 = vmatpush1.bf16.msra.mxu0 0
          %1140 = vmatprep.subr.bf16.mxu0 0
          %1141 = vmatpush1.bf16.msra.mxu0 0
          %1142 = vmatprep.subr.bf16.mxu0 0
          %1143 = vmatpush1.bf16.msra.mxu0 0
          %1144 = vmatprep.mubr.bf16.mxu0 0
          %1145 = vmatmul.mubr.bf16.gmra.mrb[0].mxu0 %v976
          %v1146 = vpop.f32.mrb[0].mxu0
          %v1147 = vadd.f32 %v532, %v1146
          %v1148 = vpop.f32.mrb[0].mxu0
          %v1149 = vadd.f32 %v532, %v1148
          %v1150 = vpop.f32.mrb[0].mxu0
          %v1151 = vadd.f32 %v537, %v1150
          %v1152 = vpop.f32.mrb[0].mxu0
          %v1153 = vadd.f32 %v537, %v1152
          %1154 = vmatprep.mubr.bf16.mxu0 0
          %1155 = vmatmul.mubr.bf16.gmra.mrb[0].mxu0 %v979
          %v1156 = vpop.f32.mrb[0].mxu0
          %v1157 = vadd.f32 %v542, %v1156
          %v1158 = vpop.f32.mrb[0].mxu0
          %v1159 = vadd.f32 %v542, %v1158
          %v1160 = vpop.f32.mrb[0].mxu0
          %v1161 = vadd.f32 %v547, %v1160
          %v1162 = vpop.f32.mrb[0].mxu0
          %v1163 = vadd.f32 %v547, %v1162
          %1164 = vmatprep.mubr.bf16.mxu0 0
          %1165 = vmatmul.mubr.bf16.gmra.mrb[0].mxu0 %v982
          %v1166 = vpop.f32.mrb[0].mxu0
          %v1167 = vadd.f32 %v552, %v1166
          %v1168 = vpop.f32.mrb[0].mxu0
          %v1169 = vadd.f32 %v552, %v1168
          %v1170 = vpop.f32.mrb[0].mxu0
          %v1171 = vadd.f32 %v557, %v1170
          %v1172 = vpop.f32.mrb[0].mxu0
          %v1173 = vadd.f32 %v557, %v1172
          %1174 = vmatprep.mubr.bf16.mxu0 0
          %1175 = vmatmul.mubr.bf16.gmra.mrb[0].mxu0 %v985
          %v1176 = vpop.f32.mrb[0].mxu0
          %v1177 = vadd.f32 %v562, %v1176
          %v1178 = vpop.f32.mrb[0].mxu0
          %v1179 = vadd.f32 %v562, %v1178
          %v1180 = vpop.f32.mrb[0].mxu0
          %v1181 = vadd.f32 %v567, %v1180
          %v1182 = vpop.f32.mrb[0].mxu0
          %v1183 = vadd.f32 %v567, %v1182
          %1184 = vmatprep.mubr.bf16.mxu0 0
          %1185 = vmatmul.mubr.bf16.gmra.mrb[0].mxu0 %v988
          %v1186 = vpop.f32.mrb[0].mxu0
          %v1187 = vadd.f32 %v572, %v1186
          %v1188 = vpop.f32.mrb[0].mxu0
          %v1189 = vadd.f32 %v572, %v1188
          %v1190 = vpop.f32.mrb[0].mxu0
          %v1191 = vadd.f32 %v577, %v1190
          %v1192 = vpop.f32.mrb[0].mxu0
          %v1193 = vadd.f32 %v577, %v1192
          %1194 = vmatprep.mubr.bf16.mxu0 0
          %1195 = vmatmul.mubr.bf16.gmra.mrb[0].mxu0 %v991
          %v1196 = vpop.f32.mrb[0].mxu0
          %v1197 = vadd.f32 %v582, %v1196
          %v1198 = vpop.f32.mrb[0].mxu0
          %v1199 = vadd.f32 %v582, %v1198
          %v1200 = vpop.f32.mrb[0].mxu0
          %v1201 = vadd.f32 %v587, %v1200
          %v1202 = vpop.f32.mrb[0].mxu0
          %v1203 = vadd.f32 %v587, %v1202
          %1204 = vmatprep.mubr.bf16.mxu0 0
          %1205 = vmatmul.mubr.bf16.gmra.mrb[0].mxu0 %v994
          %v1206 = vpop.f32.mrb[0].mxu0
          %v1207 = vadd.f32 %v592, %v1206
          %v1208 = vpop.f32.mrb[0].mxu0
          %v1209 = vadd.f32 %v592, %v1208
          %v1210 = vpop.f32.mrb[0].mxu0
          %v1211 = vadd.f32 %v597, %v1210
          %v1212 = vpop.f32.mrb[0].mxu0
          %v1213 = vadd.f32 %v597, %v1212
          %1214 = vmatprep.mubr.bf16.mxu0 0
          %1215 = vmatmul.mubr.bf16.gmra.mrb[0].mxu0 %v997
          %v1216 = vpop.f32.mrb[0].mxu0
          %v1217 = vadd.f32 %v602, %v1216
          %v1218 = vpop.f32.mrb[0].mxu0
          %v1219 = vadd.f32 %v602, %v1218
          %v1220 = vpop.f32.mrb[0].mxu0
          %v1221 = vadd.f32 %v607, %v1220
          %v1222 = vpop.f32.mrb[0].mxu0
          %v1223 = vadd.f32 %v607, %v1222
          %1224 = vdwg.mxu0
          %v1225 = vmax.f32 %v1034, 0.0
          %v1226 = vmax.f32 %v1036, 0.0
          %v1227 = vmax.f32 %v1147, 0.0
          %v1228 = vmax.f32 %v1149, 0.0
          %v1229 = vmax.f32 %v1038, 0.0
          %v1230 = vmax.f32 %v1040, 0.0
          %v1231 = vmax.f32 %v1151, 0.0
          %v1232 = vmax.f32 %v1153, 0.0
          %v1233 = vmax.f32 %v1044, 0.0
          %v1234 = vmax.f32 %v1046, 0.0
          %v1235 = vmax.f32 %v1157, 0.0
          %v1236 = vmax.f32 %v1159, 0.0
          %v1237 = vmax.f32 %v1048, 0.0
          %v1238 = vmax.f32 %v1050, 0.0
          %v1239 = vmax.f32 %v1161, 0.0
          %v1240 = vmax.f32 %v1163, 0.0
          %v1241 = vmax.f32 %v1054, 0.0
          %v1242 = vmax.f32 %v1056, 0.0
          %v1243 = vmax.f32 %v1167, 0.0
          %v1244 = vmax.f32 %v1169, 0.0
          %v1245 = vmax.f32 %v1058, 0.0
          %v1246 = vmax.f32 %v1060, 0.0
          %v1247 = vmax.f32 %v1171, 0.0
          %v1248 = vmax.f32 %v1173, 0.0
          %v1249 = vmax.f32 %v1064, 0.0
          %v1250 = vmax.f32 %v1066, 0.0
          %v1251 = vmax.f32 %v1177, 0.0
          %v1252 = vmax.f32 %v1179, 0.0
          %v1253 = vmax.f32 %v1068, 0.0
          %v1254 = vmax.f32 %v1070, 0.0
          %v1255 = vmax.f32 %v1181, 0.0
          %v1256 = vmax.f32 %v1183, 0.0
          %v1257 = vmax.f32 %v1074, 0.0
          %v1258 = vmax.f32 %v1076, 0.0
          %v1259 = vmax.f32 %v1187, 0.0
          %v1260 = vmax.f32 %v1189, 0.0
          %v1261 = vmax.f32 %v1078, 0.0
          %v1262 = vmax.f32 %v1080, 0.0
          %v1263 = vmax.f32 %v1191, 0.0
          %v1264 = vmax.f32 %v1193, 0.0
          %v1265 = vmax.f32 %v1084, 0.0
          %v1266 = vmax.f32 %v1086, 0.0
          %v1267 = vmax.f32 %v1197, 0.0
          %v1268 = vmax.f32 %v1199, 0.0
          %v1269 = vmax.f32 %v1088, 0.0
          %v1270 = vmax.f32 %v1090, 0.0
          %v1271 = vmax.f32 %v1201, 0.0
          %v1272 = vmax.f32 %v1203, 0.0
          %v1273 = vmax.f32 %v1094, 0.0
          %v1274 = vmax.f32 %v1096, 0.0
          %v1275 = vmax.f32 %v1207, 0.0
          %v1276 = vmax.f32 %v1209, 0.0
          %v1277 = vmax.f32 %v1098, 0.0
          %v1278 = vmax.f32 %v1100, 0.0
          %v1279 = vmax.f32 %v1211, 0.0
          %v1280 = vmax.f32 %v1213, 0.0
          %v1281 = vmax.f32 %v1104, 0.0
          %v1282 = vmax.f32 %v1106, 0.0
          %v1283 = vmax.f32 %v1217, 0.0
          %v1284 = vmax.f32 %v1219, 0.0
          %v1285 = vmax.f32 %v1108, 0.0
          %v1286 = vmax.f32 %v1110, 0.0
          %v1287 = vmax.f32 %v1221, 0.0
          %v1288 = vmax.f32 %v1223, 0.0
          %v1289 = vmax.f32 %v1225, %v1226
          %v1290 = vmax.f32 %v1289, %v1227
          %v1291 = vmax.f32 %v1290, %v1228
          %1292 = vmax.xlane.f32.xlu0 %v1291
          %v1293 = vpop.xlane.xlu0 %1292
          %v1294 = vmax.f32 %v1229, %v1230
          %v1295 = vmax.f32 %v1294, %v1231
          %v1296 = vmax.f32 %v1295, %v1232
          %1297 = vmax.xlane.f32.xlu0 %v1296
          %v1298 = vpop.xlane.xlu0 %1297
          %v1299 = vmax.f32 %v1233, %v1234
          %v1300 = vmax.f32 %v1299, %v1235
          %v1301 = vmax.f32 %v1300, %v1236
          %1302 = vmax.xlane.f32.xlu0 %v1301
          %v1303 = vpop.xlane.xlu0 %1302
          %v1304 = vmax.f32 %v1237, %v1238
          %v1305 = vmax.f32 %v1304, %v1239
          %v1306 = vmax.f32 %v1305, %v1240
          %1307 = vmax.xlane.f32.xlu0 %v1306
          %v1308 = vpop.xlane.xlu0 %1307
          %v1309 = vmax.f32 %v1241, %v1242
          %v1310 = vmax.f32 %v1309, %v1243
          %v1311 = vmax.f32 %v1310, %v1244
          %1312 = vmax.xlane.f32.xlu0 %v1311
          %v1313 = vpop.xlane.xlu0 %1312
          %v1314 = vmax.f32 %v1245, %v1246
          %v1315 = vmax.f32 %v1314, %v1247
          %v1316 = vmax.f32 %v1315, %v1248
          %1317 = vmax.xlane.f32.xlu0 %v1316
          %v1318 = vpop.xlane.xlu0 %1317
          %v1319 = vmax.f32 %v1249, %v1250
          %v1320 = vmax.f32 %v1319, %v1251
          %v1321 = vmax.f32 %v1320, %v1252
          %1322 = vmax.xlane.f32.xlu0 %v1321
          %v1323 = vpop.xlane.xlu0 %1322
          %v1324 = vmax.f32 %v1253, %v1254
          %v1325 = vmax.f32 %v1324, %v1255
          %v1326 = vmax.f32 %v1325, %v1256
          %1327 = vmax.xlane.f32.xlu0 %v1326
          %v1328 = vpop.xlane.xlu0 %1327
          %v1329 = vmax.f32 %v1257, %v1258
          %v1330 = vmax.f32 %v1329, %v1259
          %v1331 = vmax.f32 %v1330, %v1260
          %1332 = vmax.xlane.f32.xlu0 %v1331
          %v1333 = vpop.xlane.xlu0 %1332
          %v1334 = vmax.f32 %v1261, %v1262
          %v1335 = vmax.f32 %v1334, %v1263
          %v1336 = vmax.f32 %v1335, %v1264
          %1337 = vmax.xlane.f32.xlu0 %v1336
          %v1338 = vpop.xlane.xlu0 %1337
          %v1339 = vmax.f32 %v1265, %v1266
          %v1340 = vmax.f32 %v1339, %v1267
          %v1341 = vmax.f32 %v1340, %v1268
          %1342 = vmax.xlane.f32.xlu0 %v1341
          %v1343 = vpop.xlane.xlu0 %1342
          %v1344 = vmax.f32 %v1269, %v1270
          %v1345 = vmax.f32 %v1344, %v1271
          %v1346 = vmax.f32 %v1345, %v1272
          %1347 = vmax.xlane.f32.xlu0 %v1346
          %v1348 = vpop.xlane.xlu0 %1347
          %v1349 = vmax.f32 %v1273, %v1274
          %v1350 = vmax.f32 %v1349, %v1275
          %v1351 = vmax.f32 %v1350, %v1276
          %1352 = vmax.xlane.f32.xlu0 %v1351
          %v1353 = vpop.xlane.xlu0 %1352
          %v1354 = vmax.f32 %v1277, %v1278
          %v1355 = vmax.f32 %v1354, %v1279
          %v1356 = vmax.f32 %v1355, %v1280
          %1357 = vmax.xlane.f32.xlu0 %v1356
          %v1358 = vpop.xlane.xlu0 %1357
          %v1359 = vmax.f32 %v1281, %v1282
          %v1360 = vmax.f32 %v1359, %v1283
          %v1361 = vmax.f32 %v1360, %v1284
          %1362 = vmax.xlane.f32.xlu0 %v1361
          %v1363 = vpop.xlane.xlu0 %1362
          %v1364 = vmax.f32 %v1285, %v1286
          %v1365 = vmax.f32 %v1364, %v1287
          %v1366 = vmax.f32 %v1365, %v1288
          %1367 = vmax.xlane.f32.xlu0 %v1366
          %v1368 = vpop.xlane.xlu0 %1367
          %v1369 = vstv %s612
          %vm1370 = vcmp.eq.s32.totalorder %v610, %v1369
          %v1371 = vld [vmem:[#allocation2] sm:$0xff]
          %v1372 = vld [vmem:[#allocation2 + $0x8] sm:$0xff]
          %v1373 = vld [vmem:[#allocation2 + $0x10] sm:$0xff]
          %v1374 = vld [vmem:[#allocation2 + $0x18] sm:$0xff]
          %v1375 = vld [vmem:[#allocation2 + $0x20] sm:$0xff]
          %v1376 = vld [vmem:[#allocation2 + $0x28] sm:$0xff]
          %v1377 = vld [vmem:[#allocation2 + $0x30] sm:$0xff]
          %v1378 = vld [vmem:[#allocation2 + $0x38] sm:$0xff]
          %v1379 = vld [vmem:[#allocation2 + $0x40] sm:$0xff]
          %v1380 = vld [vmem:[#allocation2 + $0x48] sm:$0xff]
          %v1381 = vld [vmem:[#allocation2 + $0x50] sm:$0xff]
          %v1382 = vld [vmem:[#allocation2 + $0x58] sm:$0xff]
          %v1383 = vld [vmem:[#allocation2 + $0x60] sm:$0xff]
          %v1384 = vld [vmem:[#allocation2 + $0x68] sm:$0xff]
          %v1385 = vld [vmem:[#allocation2 + $0x70] sm:$0xff]
          %v1386 = vld [vmem:[#allocation2 + $0x78] sm:$0xff]
          %v1387 = vmax.f32 %v1371, %v1293
          %v1388 = vmax.f32 %v1372, %v1298
          %v1389 = vmax.f32 %v1373, %v1303
          %v1390 = vmax.f32 %v1374, %v1308
          %v1391 = vmax.f32 %v1375, %v1313
          %v1392 = vmax.f32 %v1376, %v1318
          %v1393 = vmax.f32 %v1377, %v1323
          %v1394 = vmax.f32 %v1378, %v1328
          %v1395 = vmax.f32 %v1379, %v1333
          %v1396 = vmax.f32 %v1380, %v1338
          %v1397 = vmax.f32 %v1381, %v1343
          %v1398 = vmax.f32 %v1382, %v1348
          %v1399 = vmax.f32 %v1383, %v1353
          %v1400 = vmax.f32 %v1384, %v1358
          %v1401 = vmax.f32 %v1385, %v1363
          %v1402 = vmax.f32 %v1386, %v1368
          %v1403 = vsel %vm1370, %v1387, %v1371
          %v1404 = vsel %vm1370, %v1388, %v1372
          %v1405 = vsel %vm1370, %v1389, %v1373
          %v1406 = vsel %vm1370, %v1390, %v1374
          %v1407 = vsel %vm1370, %v1391, %v1375
          %v1408 = vsel %vm1370, %v1392, %v1376
          %v1409 = vsel %vm1370, %v1393, %v1377
          %v1410 = vsel %vm1370, %v1394, %v1378
          %v1411 = vsel %vm1370, %v1395, %v1379
          %v1412 = vsel %vm1370, %v1396, %v1380
          %v1413 = vsel %vm1370, %v1397, %v1381
          %v1414 = vsel %vm1370, %v1398, %v1382
          %v1415 = vsel %vm1370, %v1399, %v1383
          %v1416 = vsel %vm1370, %v1400, %v1384
          %v1417 = vsel %vm1370, %v1401, %v1385
          %v1418 = vsel %vm1370, %v1402, %v1386
          %1419 = vst.msk [vmem:[#allocation2] sm:$0xff] %vm626, %v1403
          %1420 = vst.msk [vmem:[#allocation2 + $0x8] sm:$0xff] %vm626, %v1404
          %1421 = vst.msk [vmem:[#allocation2 + $0x10] sm:$0xff] %vm626, %v1405
          %1422 = vst.msk [vmem:[#allocation2 + $0x18] sm:$0xff] %vm626, %v1406
          %1423 = vst.msk [vmem:[#allocation2 + $0x20] sm:$0xff] %vm626, %v1407
          %1424 = vst.msk [vmem:[#allocation2 + $0x28] sm:$0xff] %vm626, %v1408
          %1425 = vst.msk [vmem:[#allocation2 + $0x30] sm:$0xff] %vm626, %v1409
          %1426 = vst.msk [vmem:[#allocation2 + $0x38] sm:$0xff] %vm626, %v1410
          %1427 = vst.msk [vmem:[#allocation2 + $0x40] sm:$0xff] %vm626, %v1411
          %1428 = vst.msk [vmem:[#allocation2 + $0x48] sm:$0xff] %vm626, %v1412
          %1429 = vst.msk [vmem:[#allocation2 + $0x50] sm:$0xff] %vm626, %v1413
          %1430 = vst.msk [vmem:[#allocation2 + $0x58] sm:$0xff] %vm626, %v1414
          %1431 = vst.msk [vmem:[#allocation2 + $0x60] sm:$0xff] %vm626, %v1415
          %1432 = vst.msk [vmem:[#allocation2 + $0x68] sm:$0xff] %vm626, %v1416
          %1433 = vst.msk [vmem:[#allocation2 + $0x70] sm:$0xff] %vm626, %v1417
          %1434 = vst.msk [vmem:[#allocation2 + $0x78] sm:$0xff] %vm626, %v1418
        $region100: #{tpu_custom_call.1} parent=86 // loop_footer
          %s616 = sadd.s32 1, %s612
        $region101: #{tpu_custom_call.1} parent=86 // loop_footer_branch
          %611 = sbr.rel target = $region97
        $region102: #{tpu_custom_call.1} parent=86 // loop_exit
          _
        %p1435 = scmp.eq.s32.totalorder %s28, 1
        // Predicated region
        $region103: #{tpu_custom_call.1} parent=86 // pred_check
          %p1436 = pneg %p1435
        $region104: #{tpu_custom_call.1} parent=86 // pred_check_branch
          %1438 = sbr.rel (%p1436) target = $region106
        $region105: #{tpu_custom_call.1} parent=86 // pred_region
          %v1439 = vld [vmem:[#allocation2] sm:$0xff]
          %v1440 = vld [vmem:[#allocation2 + $0x8] sm:$0xff]
          %v1441 = vld [vmem:[#allocation2 + $0x10] sm:$0xff]
          %v1442 = vld [vmem:[#allocation2 + $0x18] sm:$0xff]
          %v1443 = vld [vmem:[#allocation2 + $0x20] sm:$0xff]
          %v1444 = vld [vmem:[#allocation2 + $0x28] sm:$0xff]
          %v1445 = vld [vmem:[#allocation2 + $0x30] sm:$0xff]
          %v1446 = vld [vmem:[#allocation2 + $0x38] sm:$0xff]
          %v1447 = vld [vmem:[#allocation2 + $0x40] sm:$0xff]
          %v1448 = vld [vmem:[#allocation2 + $0x48] sm:$0xff]
          %v1449 = vld [vmem:[#allocation2 + $0x50] sm:$0xff]
          %v1450 = vld [vmem:[#allocation2 + $0x58] sm:$0xff]
          %v1451 = vld [vmem:[#allocation2 + $0x60] sm:$0xff]
          %v1452 = vld [vmem:[#allocation2 + $0x68] sm:$0xff]
          %v1453 = vld [vmem:[#allocation2 + $0x70] sm:$0xff]
          %v1454 = vld [vmem:[#allocation2 + $0x78] sm:$0xff]
          %v1455 = vld [vmem:[%s4] sm:$0xf]
          %v1456 = vld [vmem:[%s4 + $0x4] sm:$0xf]
          %v1457 = vld [vmem:[%s4 + $0x8] sm:$0xf]
          %v1458 = vld [vmem:[%s4 + $0xc] sm:$0xf]
          %v1459 = vpack.c.bf16 %v1440, %v1439
          %v1460 = vpack.c.bf16 %v1442, %v1441
          %v1461 = vpack.c.bf16 %v1444, %v1443
          %v1462 = vpack.c.bf16 %v1446, %v1445
          %v1463 = vpack.c.bf16 %v1448, %v1447
          %v1464 = vpack.c.bf16 %v1450, %v1449
          %v1465 = vpack.c.bf16 %v1452, %v1451
          %v1466 = vpack.c.bf16 %v1454, %v1453
          %v1467 = vld [vmem:[%s5] sm:$0xff]
          %v1468 = vld [vmem:[%s5 + $0x8] sm:$0xff]
          %v1469 = vld [vmem:[%s5 + $0x10] sm:$0xff]
          %v1470 = vld [vmem:[%s5 + $0x18] sm:$0xff]
          %1472 = vset.pattern.permute.xlu0 0
          %1473 = vperm.xlu0 %1472, %v1467
          %v1474 = vpop.permute.xlu0 %1473
          %1477 = vset.pattern.permute.xlu0 0
          %1478 = vperm.xlu0 %1477, %v1468
          %v1479 = vpop.permute.xlu0 %1478
          %1482 = vset.pattern.permute.xlu0 0
          %1483 = vperm.xlu0 %1482, %v1469
          %v1484 = vpop.permute.xlu0 %1483
          %1487 = vset.pattern.permute.xlu0 0
          %1488 = vperm.xlu0 %1487, %v1470
          %v1489 = vpop.permute.xlu0 %1488
          %v1495 = vunpack.c.l.b16 %v1455
          %v1496 = vunpack.c.l.b16 %v1456
          %v1497 = vunpack.c.l.b16 %v1457
          %v1498 = vunpack.c.l.b16 %v1458
          %v1499 = vpack.c.b16 %v1496, %v1495
          %v1500 = vpack.c.b16 %v1498, %v1497
          %1503 = vmatprep.subr.bf16.mxu0 0
          %1504 = vmatpush1.bf16.msra.mxu0 %v1459
          %1505 = vmatprep.subr.bf16.mxu0 0
          %1506 = vmatpush1.bf16.msra.mxu0 %v1460
          %1507 = vmatprep.subr.bf16.mxu0 0
          %1508 = vmatpush1.bf16.msra.mxu0 %v1461
          %1509 = vmatprep.subr.bf16.mxu0 0
          %1510 = vmatpush1.bf16.msra.mxu0 %v1462
          %1511 = vmatprep.subr.bf16.mxu0 0
          %1512 = vmatpush1.bf16.msra.mxu0 %v1463
          %1513 = vmatprep.subr.bf16.mxu0 0
          %1514 = vmatpush1.bf16.msra.mxu0 %v1464
          %1515 = vmatprep.subr.bf16.mxu0 0
          %1516 = vmatpush1.bf16.msra.mxu0 %v1465
          %1517 = vmatprep.subr.bf16.mxu0 0
          %1518 = vmatpush1.bf16.msra.mxu0 %v1466
          %1519 = vmatprep.subr.bf16.mxu0 0
          %1520 = vmatpush1.bf16.msra.mxu0 0
          %1521 = vmatprep.subr.bf16.mxu0 0
          %1522 = vmatpush1.bf16.msra.mxu0 0
          %1523 = vmatprep.subr.bf16.mxu0 0
          %1524 = vmatpush1.bf16.msra.mxu0 0
          %1525 = vmatprep.subr.bf16.mxu0 0
          %1526 = vmatpush1.bf16.msra.mxu0 0
          %1527 = vmatprep.subr.bf16.mxu0 0
          %1528 = vmatpush1.bf16.msra.mxu0 0
          %1529 = vmatprep.subr.bf16.mxu0 0
          %1530 = vmatpush1.bf16.msra.mxu0 0
          %1531 = vmatprep.subr.bf16.mxu0 0
          %1532 = vmatpush1.bf16.msra.mxu0 0
          %1533 = vmatprep.subr.bf16.mxu0 0
          %1534 = vmatpush1.bf16.msra.mxu0 0
          %1535 = vmatprep.mubr.bf16.mxu0 0
          %1536 = vmatmul.mubr.bf16.gmra.mrb[0].mxu0 %v1499
          %v1537 = vpop.f32.mrb[0].mxu0
          %v1538 = vadd.f32 %v1474, %v1537
          %v1539 = vpop.f32.mrb[0].mxu0
          %v1540 = vpop.f32.mrb[0].mxu0
          %v1541 = vadd.f32 %v1479, %v1540
          %v1542 = vpop.f32.mrb[0].mxu0
          %1543 = vmatprep.mubr.bf16.mxu0 0
          %1544 = vmatmul.mubr.bf16.gmra.mrb[0].mxu0 %v1500
          %v1545 = vpop.f32.mrb[0].mxu0
          %v1546 = vadd.f32 %v1484, %v1545
          %v1547 = vpop.f32.mrb[0].mxu0
          %v1548 = vpop.f32.mrb[0].mxu0
          %v1549 = vadd.f32 %v1489, %v1548
          %v1550 = vpop.f32.mrb[0].mxu0
          %1551 = vdwg.mxu0
          %v1552 = vld [vmem:[%s6] sm:$0xf]
          %v1553 = vld [vmem:[%s6 + $0x4] sm:$0xf]
          %v1554 = vld [vmem:[%s6 + $0x8] sm:$0xf]
          %v1555 = vld [vmem:[%s6 + $0xc] sm:$0xf]
          %v1556 = vld [vmem:[%s6 + $0x10] sm:$0xf]
          %v1557 = vld [vmem:[%s6 + $0x14] sm:$0xf]
          %v1558 = vld [vmem:[%s6 + $0x18] sm:$0xf]
          %v1559 = vld [vmem:[%s6 + $0x1c] sm:$0xf]
          %v1560 = vpack.c.bf16 %v1541, %v1538
          %v1561 = vpack.c.bf16 %v1549, %v1546
          %v1562 = vld [vmem:[%s7] sm:$0xff]
          %v1563 = vld [vmem:[%s7 + $0x8] sm:$0xff]
          %v1564 = vld [vmem:[%s7 + $0x10] sm:$0xff]
          %v1565 = vld [vmem:[%s7 + $0x18] sm:$0xff]
          %v1566 = vld [vmem:[%s7 + $0x20] sm:$0xff]
          %v1567 = vld [vmem:[%s7 + $0x28] sm:$0xff]
          %v1568 = vld [vmem:[%s7 + $0x30] sm:$0xff]
          %v1569 = vld [vmem:[%s7 + $0x38] sm:$0xff]
          %1571 = vset.pattern.permute.xlu0 0
          %1572 = vperm.xlu0 %1571, %v1562
          %v1573 = vpop.permute.xlu0 %1572
          %1576 = vset.pattern.permute.xlu0 0
          %1577 = vperm.xlu0 %1576, %v1563
          %v1578 = vpop.permute.xlu0 %1577
          %1581 = vset.pattern.permute.xlu0 0
          %1582 = vperm.xlu0 %1581, %v1564
          %v1583 = vpop.permute.xlu0 %1582
          %1586 = vset.pattern.permute.xlu0 0
          %1587 = vperm.xlu0 %1586, %v1565
          %v1588 = vpop.permute.xlu0 %1587
          %1591 = vset.pattern.permute.xlu0 0
          %1592 = vperm.xlu0 %1591, %v1566
          %v1593 = vpop.permute.xlu0 %1592
          %1596 = vset.pattern.permute.xlu0 0
          %1597 = vperm.xlu0 %1596, %v1567
          %v1598 = vpop.permute.xlu0 %1597
          %1601 = vset.pattern.permute.xlu0 0
          %1602 = vperm.xlu0 %1601, %v1568
          %v1603 = vpop.permute.xlu0 %1602
          %1606 = vset.pattern.permute.xlu0 0
          %1607 = vperm.xlu0 %1606, %v1569
          %v1608 = vpop.permute.xlu0 %1607
          %v1618 = vunpack.c.l.b16 %v1552
          %v1619 = vunpack.c.l.b16 %v1553
          %v1620 = vunpack.c.l.b16 %v1554
          %v1621 = vunpack.c.l.b16 %v1555
          %v1622 = vunpack.c.l.b16 %v1556
          %v1623 = vunpack.c.l.b16 %v1557
          %v1624 = vunpack.c.l.b16 %v1558
          %v1625 = vunpack.c.l.b16 %v1559
          %v1626 = vpack.c.b16 %v1619, %v1618
          %v1627 = vpack.c.b16 %v1621, %v1620
          %v1628 = vpack.c.b16 %v1623, %v1622
          %v1629 = vpack.c.b16 %v1625, %v1624
          %vm1630 = vcmask 261120
          %v1632 = vsel %vm1630, %v1626, 0
          %v1635 = vsel %vm1630, %v1627, 0
          %v1638 = vsel %vm1630, %v1628, 0
          %v1641 = vsel %vm1630, %v1629, 0
          %1643 = vmatprep.subr.bf16.mxu0 0
          %1644 = vmatpush1.bf16.msra.mxu0 %v1560
          %1645 = vmatprep.subr.bf16.mxu0 0
          %1646 = vmatpush1.bf16.msra.mxu0 %v1561
          %1647 = vmatprep.subr.bf16.mxu0 0
          %1648 = vmatpush1.bf16.msra.mxu0 0
          %1649 = vmatprep.subr.bf16.mxu0 0
          %1650 = vmatpush1.bf16.msra.mxu0 0
          %1651 = vmatprep.subr.bf16.mxu0 0
          %1652 = vmatpush1.bf16.msra.mxu0 0
          %1653 = vmatprep.subr.bf16.mxu0 0
          %1654 = vmatpush1.bf16.msra.mxu0 0
          %1655 = vmatprep.subr.bf16.mxu0 0
          %1656 = vmatpush1.bf16.msra.mxu0 0
          %1657 = vmatprep.subr.bf16.mxu0 0
          %1658 = vmatpush1.bf16.msra.mxu0 0
          %1659 = vmatprep.subr.bf16.mxu0 0
          %1660 = vmatpush1.bf16.msra.mxu0 0
          %1661 = vmatprep.subr.bf16.mxu0 0
          %1662 = vmatpush1.bf16.msra.mxu0 0
          %1663 = vmatprep.subr.bf16.mxu0 0
          %1664 = vmatpush1.bf16.msra.mxu0 0
          %1665 = vmatprep.subr.bf16.mxu0 0
          %1666 = vmatpush1.bf16.msra.mxu0 0
          %1667 = vmatprep.subr.bf16.mxu0 0
          %1668 = vmatpush1.bf16.msra.mxu0 0
          %1669 = vmatprep.subr.bf16.mxu0 0
          %1670 = vmatpush1.bf16.msra.mxu0 0
          %1671 = vmatprep.subr.bf16.mxu0 0
          %1672 = vmatpush1.bf16.msra.mxu0 0
          %1673 = vmatprep.subr.bf16.mxu0 0
          %1674 = vmatpush1.bf16.msra.mxu0 0
          %1675 = vmatprep.mubr.bf16.mxu0 0
          %1676 = vmatmul.mubr.bf16.gmra.mrb[0].mxu0 %v1632
          %v1677 = vpop.f32.mrb[0].mxu0
          %v1678 = vadd.f32 %v1573, %v1677
          %v1679 = vpop.f32.mrb[0].mxu0
          %v1680 = vpop.f32.mrb[0].mxu0
          %v1681 = vadd.f32 %v1578, %v1680
          %v1682 = vpop.f32.mrb[0].mxu0
          %1683 = vmatprep.mubr.bf16.mxu0 0
          %1684 = vmatmul.mubr.bf16.gmra.mrb[0].mxu0 %v1635
          %v1685 = vpop.f32.mrb[0].mxu0
          %v1686 = vadd.f32 %v1583, %v1685
          %v1687 = vpop.f32.mrb[0].mxu0
          %v1688 = vpop.f32.mrb[0].mxu0
          %v1689 = vadd.f32 %v1588, %v1688
          %v1690 = vpop.f32.mrb[0].mxu0
          %1691 = vmatprep.mubr.bf16.mxu0 0
          %1692 = vmatmul.mubr.bf16.gmra.mrb[0].mxu0 %v1638
          %v1693 = vpop.f32.mrb[0].mxu0
          %v1694 = vadd.f32 %v1593, %v1693
          %v1695 = vpop.f32.mrb[0].mxu0
          %v1696 = vpop.f32.mrb[0].mxu0
          %v1697 = vadd.f32 %v1598, %v1696
          %v1698 = vpop.f32.mrb[0].mxu0
          %1699 = vmatprep.mubr.bf16.mxu0 0
          %1700 = vmatmul.mubr.bf16.gmra.mrb[0].mxu0 %v1641
          %v1701 = vpop.f32.mrb[0].mxu0
          %v1702 = vadd.f32 %v1603, %v1701
          %v1703 = vpop.f32.mrb[0].mxu0
          %v1704 = vpop.f32.mrb[0].mxu0
          %v1705 = vadd.f32 %v1608, %v1704
          %v1706 = vpop.f32.mrb[0].mxu0
          %1707 = vdwg.mxu0
          %v1708 = vmax.f32 %v1678, 0.0
          %v1709 = vmax.f32 %v1681, 0.0
          %v1710 = vmax.f32 %v1686, 0.0
          %v1711 = vmax.f32 %v1689, 0.0
          %v1712 = vmax.f32 %v1694, 0.0
          %v1713 = vmax.f32 %v1697, 0.0
          %v1714 = vmax.f32 %v1702, 0.0
          %v1715 = vmax.f32 %v1705, 0.0
          %v1716 = vld [vmem:[%s8] sm:$0xf]
          %v1717 = vld [vmem:[%s8 + $0x4] sm:$0xf]
          %v1718 = vld [vmem:[%s8 + $0x8] sm:$0xf]
          %v1719 = vld [vmem:[%s8 + $0xc] sm:$0xf]
          %v1720 = vld [vmem:[%s8 + $0x10] sm:$0xf]
          %v1721 = vld [vmem:[%s8 + $0x14] sm:$0xf]
          %v1722 = vld [vmem:[%s8 + $0x18] sm:$0xf]
          %v1723 = vld [vmem:[%s8 + $0x1c] sm:$0xf]
          %v1724 = vld [vmem:[%s8 + $0x20] sm:$0xf]
          %v1725 = vld [vmem:[%s8 + $0x24] sm:$0xf]
          %v1726 = vld [vmem:[%s8 + $0x28] sm:$0xf]
          %v1727 = vld [vmem:[%s8 + $0x2c] sm:$0xf]
          %v1728 = vld [vmem:[%s8 + $0x30] sm:$0xf]
          %v1729 = vld [vmem:[%s8 + $0x34] sm:$0xf]
          %v1730 = vld [vmem:[%s8 + $0x38] sm:$0xf]
          %v1731 = vld [vmem:[%s8 + $0x3c] sm:$0xf]
          %v1732 = vpack.c.bf16 %v1709, %v1708
          %v1733 = vpack.c.bf16 %v1711, %v1710
          %v1734 = vpack.c.bf16 %v1713, %v1712
          %v1735 = vpack.c.bf16 %v1715, %v1714
          %v1736 = vld [vmem:[%s9] sm:$0xff]
          %v1737 = vld [vmem:[%s9 + $0x8] sm:$0xff]
          %v1738 = vld [vmem:[%s9 + $0x10] sm:$0xff]
          %v1739 = vld [vmem:[%s9 + $0x18] sm:$0xff]
          %v1740 = vld [vmem:[%s9 + $0x20] sm:$0xff]
          %v1741 = vld [vmem:[%s9 + $0x28] sm:$0xff]
          %v1742 = vld [vmem:[%s9 + $0x30] sm:$0xff]
          %v1743 = vld [vmem:[%s9 + $0x38] sm:$0xff]
          %v1744 = vld [vmem:[%s9 + $0x40] sm:$0xff]
          %v1745 = vld [vmem:[%s9 + $0x48] sm:$0xff]
          %v1746 = vld [vmem:[%s9 + $0x50] sm:$0xff]
          %v1747 = vld [vmem:[%s9 + $0x58] sm:$0xff]
          %v1748 = vld [vmem:[%s9 + $0x60] sm:$0xff]
          %v1749 = vld [vmem:[%s9 + $0x68] sm:$0xff]
          %v1750 = vld [vmem:[%s9 + $0x70] sm:$0xff]
          %v1751 = vld [vmem:[%s9 + $0x78] sm:$0xff]
          %1753 = vset.pattern.permute.xlu0 0
          %1754 = vperm.xlu0 %1753, %v1736
          %v1755 = vpop.permute.xlu0 %1754
          %1758 = vset.pattern.permute.xlu0 0
          %1759 = vperm.xlu0 %1758, %v1737
          %v1760 = vpop.permute.xlu0 %1759
          %1763 = vset.pattern.permute.xlu0 0
          %1764 = vperm.xlu0 %1763, %v1738
          %v1765 = vpop.permute.xlu0 %1764
          %1768 = vset.pattern.permute.xlu0 0
          %1769 = vperm.xlu0 %1768, %v1739
          %v1770 = vpop.permute.xlu0 %1769
          %1773 = vset.pattern.permute.xlu0 0
          %1774 = vperm.xlu0 %1773, %v1740
          %v1775 = vpop.permute.xlu0 %1774
          %1778 = vset.pattern.permute.xlu0 0
          %1779 = vperm.xlu0 %1778, %v1741
          %v1780 = vpop.permute.xlu0 %1779
          %1783 = vset.pattern.permute.xlu0 0
          %1784 = vperm.xlu0 %1783, %v1742
          %v1785 = vpop.permute.xlu0 %1784
          %1788 = vset.pattern.permute.xlu0 0
          %1789 = vperm.xlu0 %1788, %v1743
          %v1790 = vpop.permute.xlu0 %1789
          %1793 = vset.pattern.permute.xlu0 0
          %1794 = vperm.xlu0 %1793, %v1744
          %v1795 = vpop.permute.xlu0 %1794
          %1798 = vset.pattern.permute.xlu0 0
          %1799 = vperm.xlu0 %1798, %v1745
          %v1800 = vpop.permute.xlu0 %1799
          %1803 = vset.pattern.permute.xlu0 0
          %1804 = vperm.xlu0 %1803, %v1746
          %v1805 = vpop.permute.xlu0 %1804
          %1808 = vset.pattern.permute.xlu0 0
          %1809 = vperm.xlu0 %1808, %v1747
          %v1810 = vpop.permute.xlu0 %1809
          %1813 = vset.pattern.permute.xlu0 0
          %1814 = vperm.xlu0 %1813, %v1748
          %v1815 = vpop.permute.xlu0 %1814
          %1818 = vset.pattern.permute.xlu0 0
          %1819 = vperm.xlu0 %1818, %v1749
          %v1820 = vpop.permute.xlu0 %1819
          %1823 = vset.pattern.permute.xlu0 0
          %1824 = vperm.xlu0 %1823, %v1750
          %v1825 = vpop.permute.xlu0 %1824
          %1828 = vset.pattern.permute.xlu0 0
          %1829 = vperm.xlu0 %1828, %v1751
          %v1830 = vpop.permute.xlu0 %1829
          %v1848 = vunpack.c.l.b16 %v1716
          %v1849 = vunpack.c.l.b16 %v1717
          %v1850 = vunpack.c.l.b16 %v1718
          %v1851 = vunpack.c.l.b16 %v1719
          %v1852 = vunpack.c.l.b16 %v1720
          %v1853 = vunpack.c.l.b16 %v1721
          %v1854 = vunpack.c.l.b16 %v1722
          %v1855 = vunpack.c.l.b16 %v1723
          %v1856 = vunpack.c.l.b16 %v1724
          %v1857 = vunpack.c.l.b16 %v1725
          %v1858 = vunpack.c.l.b16 %v1726
          %v1859 = vunpack.c.l.b16 %v1727
          %v1860 = vunpack.c.l.b16 %v1728
          %v1861 = vunpack.c.l.b16 %v1729
          %v1862 = vunpack.c.l.b16 %v1730
          %v1863 = vunpack.c.l.b16 %v1731
          %v1864 = vpack.c.b16 %v1849, %v1848
          %v1865 = vpack.c.b16 %v1851, %v1850
          %v1866 = vpack.c.b16 %v1853, %v1852
          %v1867 = vpack.c.b16 %v1855, %v1854
          %v1868 = vpack.c.b16 %v1857, %v1856
          %v1869 = vpack.c.b16 %v1859, %v1858
          %v1870 = vpack.c.b16 %v1861, %v1860
          %v1871 = vpack.c.b16 %v1863, %v1862
          %vm1872 = vcmask 523264
          %v1874 = vsel %vm1872, %v1864, 0
          %v1877 = vsel %vm1872, %v1865, 0
          %v1880 = vsel %vm1872, %v1866, 0
          %v1883 = vsel %vm1872, %v1867, 0
          %v1886 = vsel %vm1872, %v1868, 0
          %v1889 = vsel %vm1872, %v1869, 0
          %v1892 = vsel %vm1872, %v1870, 0
          %v1895 = vsel %vm1872, %v1871, 0
          %1897 = vmatprep.subr.bf16.mxu0 0
          %1898 = vmatpush1.bf16.msra.mxu0 %v1732
          %1899 = vmatprep.subr.bf16.mxu0 0
          %1900 = vmatpush1.bf16.msra.mxu0 %v1733
          %1901 = vmatprep.subr.bf16.mxu0 0
          %1902 = vmatpush1.bf16.msra.mxu0 %v1734
          %1903 = vmatprep.subr.bf16.mxu0 0
          %1904 = vmatpush1.bf16.msra.mxu0 %v1735
          %1905 = vmatprep.subr.bf16.mxu0 0
          %1906 = vmatpush1.bf16.msra.mxu0 0
          %1907 = vmatprep.subr.bf16.mxu0 0
          %1908 = vmatpush1.bf16.msra.mxu0 0
          %1909 = vmatprep.subr.bf16.mxu0 0
          %1910 = vmatpush1.bf16.msra.mxu0 0
          %1911 = vmatprep.subr.bf16.mxu0 0
          %1912 = vmatpush1.bf16.msra.mxu0 0
          %1913 = vmatprep.subr.bf16.mxu0 0
          %1914 = vmatpush1.bf16.msra.mxu0 0
          %1915 = vmatprep.subr.bf16.mxu0 0
          %1916 = vmatpush1.bf16.msra.mxu0 0
          %1917 = vmatprep.subr.bf16.mxu0 0
          %1918 = vmatpush1.bf16.msra.mxu0 0
          %1919 = vmatprep.subr.bf16.mxu0 0
          %1920 = vmatpush1.bf16.msra.mxu0 0
          %1921 = vmatprep.subr.bf16.mxu0 0
          %1922 = vmatpush1.bf16.msra.mxu0 0
          %1923 = vmatprep.subr.bf16.mxu0 0
          %1924 = vmatpush1.bf16.msra.mxu0 0
          %1925 = vmatprep.subr.bf16.mxu0 0
          %1926 = vmatpush1.bf16.msra.mxu0 0
          %1927 = vmatprep.subr.bf16.mxu0 0
          %1928 = vmatpush1.bf16.msra.mxu0 0
          %1929 = vmatprep.mubr.bf16.mxu0 0
          %1930 = vmatmul.mubr.bf16.gmra.mrb[0].mxu0 %v1874
          %v1931 = vpop.f32.mrb[0].mxu0
          %v1932 = vadd.f32 %v1755, %v1931
          %v1933 = vpop.f32.mrb[0].mxu0
          %v1934 = vpop.f32.mrb[0].mxu0
          %v1935 = vadd.f32 %v1760, %v1934
          %v1936 = vpop.f32.mrb[0].mxu0
          %1937 = vmatprep.mubr.bf16.mxu0 0
          %1938 = vmatmul.mubr.bf16.gmra.mrb[0].mxu0 %v1877
          %v1939 = vpop.f32.mrb[0].mxu0
          %v1940 = vadd.f32 %v1765, %v1939
          %v1941 = vpop.f32.mrb[0].mxu0
          %v1942 = vpop.f32.mrb[0].mxu0
          %v1943 = vadd.f32 %v1770, %v1942
          %v1944 = vpop.f32.mrb[0].mxu0
          %1945 = vmatprep.mubr.bf16.mxu0 0
          %1946 = vmatmul.mubr.bf16.gmra.mrb[0].mxu0 %v1880
          %v1947 = vpop.f32.mrb[0].mxu0
          %v1948 = vadd.f32 %v1775, %v1947
          %v1949 = vpop.f32.mrb[0].mxu0
          %v1950 = vpop.f32.mrb[0].mxu0
          %v1951 = vadd.f32 %v1780, %v1950
          %v1952 = vpop.f32.mrb[0].mxu0
          %1953 = vmatprep.mubr.bf16.mxu0 0
          %1954 = vmatmul.mubr.bf16.gmra.mrb[0].mxu0 %v1883
          %v1955 = vpop.f32.mrb[0].mxu0
          %v1956 = vadd.f32 %v1785, %v1955
          %v1957 = vpop.f32.mrb[0].mxu0
          %v1958 = vpop.f32.mrb[0].mxu0
          %v1959 = vadd.f32 %v1790, %v1958
          %v1960 = vpop.f32.mrb[0].mxu0
          %1961 = vmatprep.mubr.bf16.mxu0 0
          %1962 = vmatmul.mubr.bf16.gmra.mrb[0].mxu0 %v1886
          %v1963 = vpop.f32.mrb[0].mxu0
          %v1964 = vadd.f32 %v1795, %v1963
          %v1965 = vpop.f32.mrb[0].mxu0
          %v1966 = vpop.f32.mrb[0].mxu0
          %v1967 = vadd.f32 %v1800, %v1966
          %v1968 = vpop.f32.mrb[0].mxu0
          %1969 = vmatprep.mubr.bf16.mxu0 0
          %1970 = vmatmul.mubr.bf16.gmra.mrb[0].mxu0 %v1889
          %v1971 = vpop.f32.mrb[0].mxu0
          %v1972 = vadd.f32 %v1805, %v1971
          %v1973 = vpop.f32.mrb[0].mxu0
          %v1974 = vpop.f32.mrb[0].mxu0
          %v1975 = vadd.f32 %v1810, %v1974
          %v1976 = vpop.f32.mrb[0].mxu0
          %1977 = vmatprep.mubr.bf16.mxu0 0
          %1978 = vmatmul.mubr.bf16.gmra.mrb[0].mxu0 %v1892
          %v1979 = vpop.f32.mrb[0].mxu0
          %v1980 = vadd.f32 %v1815, %v1979
          %v1981 = vpop.f32.mrb[0].mxu0
          %v1982 = vpop.f32.mrb[0].mxu0
          %v1983 = vadd.f32 %v1820, %v1982
          %v1984 = vpop.f32.mrb[0].mxu0
          %1985 = vmatprep.mubr.bf16.mxu0 0
          %1986 = vmatmul.mubr.bf16.gmra.mrb[0].mxu0 %v1895
          %v1987 = vpop.f32.mrb[0].mxu0
          %v1988 = vadd.f32 %v1825, %v1987
          %v1989 = vpop.f32.mrb[0].mxu0
          %v1990 = vpop.f32.mrb[0].mxu0
          %v1991 = vadd.f32 %v1830, %v1990
          %v1992 = vpop.f32.mrb[0].mxu0
          %1993 = vdwg.mxu0
          %v1994 = vmax.f32 %v1932, 0.0
          %v1995 = vmax.f32 %v1935, 0.0
          %v1996 = vmax.f32 %v1940, 0.0
          %v1997 = vmax.f32 %v1943, 0.0
          %v1998 = vmax.f32 %v1948, 0.0
          %v1999 = vmax.f32 %v1951, 0.0
          %v2000 = vmax.f32 %v1956, 0.0
          %v2001 = vmax.f32 %v1959, 0.0
          %v2002 = vmax.f32 %v1964, 0.0
          %v2003 = vmax.f32 %v1967, 0.0
          %v2004 = vmax.f32 %v1972, 0.0
          %v2005 = vmax.f32 %v1975, 0.0
          %v2006 = vmax.f32 %v1980, 0.0
          %v2007 = vmax.f32 %v1983, 0.0
          %v2008 = vmax.f32 %v1988, 0.0
          %v2009 = vmax.f32 %v1991, 0.0
          %v2010 = vld [vmem:[%s10] sm:$0xf]
          %v2011 = vld [vmem:[%s10 + $0x4] sm:$0xf]
          %v2012 = vld [vmem:[%s10 + $0x8] sm:$0xf]
          %v2013 = vpack.c.bf16 %v1995, %v1994
          %v2014 = vpack.c.bf16 %v1997, %v1996
          %v2015 = vpack.c.bf16 %v1999, %v1998
          %v2016 = vpack.c.bf16 %v2001, %v2000
          %v2017 = vpack.c.bf16 %v2003, %v2002
          %v2018 = vpack.c.bf16 %v2005, %v2004
          %v2019 = vpack.c.bf16 %v2007, %v2006
          %v2020 = vpack.c.bf16 %v2009, %v2008
          %v2021 = vld [vmem:[%s11] sm:$0xff]
          %v2022 = vld [vmem:[%s11 + $0x8] sm:$0xff]
          %v2023 = vld [vmem:[%s11 + $0x10] sm:$0xff]
          %2025 = vset.pattern.permute.xlu0 0
          %2026 = vperm.xlu0 %2025, %v2021
          %v2027 = vpop.permute.xlu0 %2026
          %2030 = vset.pattern.permute.xlu0 0
          %2031 = vperm.xlu0 %2030, %v2022
          %v2032 = vpop.permute.xlu0 %2031
          %2035 = vset.pattern.permute.xlu0 0
          %2036 = vperm.xlu0 %2035, %v2023
          %v2037 = vpop.permute.xlu0 %2036
          %v2042 = vunpack.c.l.b16 %v2010
          %v2043 = vunpack.c.l.b16 %v2011
          %v2044 = vunpack.c.l.b16 %v2012
          %v2045 = vpack.c.b16 %v2043, %v2042
          %v2046 = vpack.c.b16 %v2044, %v2044
          %2049 = vmatprep.subr.bf16.mxu0 0
          %2050 = vmatpush1.bf16.msra.mxu0 %v2013
          %2051 = vmatprep.subr.bf16.mxu0 0
          %2052 = vmatpush1.bf16.msra.mxu0 %v2014
          %2053 = vmatprep.subr.bf16.mxu0 0
          %2054 = vmatpush1.bf16.msra.mxu0 %v2015
          %2055 = vmatprep.subr.bf16.mxu0 0
          %2056 = vmatpush1.bf16.msra.mxu0 %v2016
          %2057 = vmatprep.subr.bf16.mxu0 0
          %2058 = vmatpush1.bf16.msra.mxu0 %v2017
          %2059 = vmatprep.subr.bf16.mxu0 0
          %2060 = vmatpush1.bf16.msra.mxu0 %v2018
          %2061 = vmatprep.subr.bf16.mxu0 0
          %2062 = vmatpush1.bf16.msra.mxu0 %v2019
          %2063 = vmatprep.subr.bf16.mxu0 0
          %2064 = vmatpush1.bf16.msra.mxu0 %v2020
          %2065 = vmatprep.subr.bf16.mxu0 0
          %2066 = vmatpush1.bf16.msra.mxu0 0
          %2067 = vmatprep.subr.bf16.mxu0 0
          %2068 = vmatpush1.bf16.msra.mxu0 0
          %2069 = vmatprep.subr.bf16.mxu0 0
          %2070 = vmatpush1.bf16.msra.mxu0 0
          %2071 = vmatprep.subr.bf16.mxu0 0
          %2072 = vmatpush1.bf16.msra.mxu0 0
          %2073 = vmatprep.subr.bf16.mxu0 0
          %2074 = vmatpush1.bf16.msra.mxu0 0
          %2075 = vmatprep.subr.bf16.mxu0 0
          %2076 = vmatpush1.bf16.msra.mxu0 0
          %2077 = vmatprep.subr.bf16.mxu0 0
          %2078 = vmatpush1.bf16.msra.mxu0 0
          %2079 = vmatprep.subr.bf16.mxu0 0
          %2080 = vmatpush1.bf16.msra.mxu0 0
          %2081 = vmatprep.mubr.bf16.mxu0 0
          %2082 = vmatmul.mubr.bf16.gmra.mrb[0].mxu0 %v2045
          %v2083 = vpop.f32.mrb[0].mxu0
          %v2084 = vadd.f32 %v2027, %v2083
          %v2085 = vpop.f32.mrb[0].mxu0
          %v2086 = vpop.f32.mrb[0].mxu0
          %v2087 = vadd.f32 %v2032, %v2086
          %v2088 = vpop.f32.mrb[0].mxu0
          %2089 = vmatprep.mubr.bf16.mxu0 0
          %2090 = vmatmul.mubr.bf16.gmra.mrb[0].mxu0 %v2046
          %v2091 = vpop.f32.mrb[0].mxu0
          %v2092 = vadd.f32 %v2037, %v2091
          %v2093 = vpop.f32.mrb[0].mxu0
          %v2094 = vpop.f32.mrb[0].mxu0
          %v2095 = vpop.f32.mrb[0].mxu0
          %2096 = vdwg.mxu0
          %vm2097 = vcmask 31744
          %2098 = vst.msk [vmem:[%s466] sm:$0xff] %vm2097, %v2084
          %2099 = vst.msk [vmem:[%s466 + $0x8] sm:$0xff] %vm2097, %v2087
          %2100 = vst.msk [vmem:[%s466 + $0x10] sm:$0xff] %vm2097, %v2092
        $region106: #{tpu_custom_call.1} parent=86 // pred_fallthru
          _
        %p2101 = scmp.lt.s32.totalorder %s27, 1
        %s2102 = scalar_select %p2101, %s27, 1
        %s2103 = smul.addr %s2102, 3
        %s2104 = smul.addr %s2103, 8
        %s2105 = scalar_lea.vmem %s12, %s2104
        // Predicated region
        $region107: #{tpu_custom_call.1} parent=86 // pred_check
          %p2106 = pneg %p312
        $region108: #{tpu_custom_call.1} parent=86 // pred_check_branch
          %2108 = sbr.rel (%p2106) target = $region110
        $region109: #{tpu_custom_call.1} parent=86 // pred_region
          _
        $region110: #{tpu_custom_call.1} parent=86 // pred_fallthru
          _
      $region87: #{tpu_custom_call.1} parent=5 // pred_fallthru
        _
      %p2109 = scmp.le.s32.totalorder 2, %s18
      // Predicated region
      $region111: #{tpu_custom_call.1} parent=5 // pred_check
        %p2110 = pneg %p2109
      $region112: #{tpu_custom_call.1} parent=5 // pred_check_branch
        %2112 = sbr.rel (%p2110) target = $region114
      $region113: #{tpu_custom_call.1} parent=5 // pred_region
        %s2113 = ssub.s32 %s18, 2
        // Predicated region
        $region115: #{tpu_custom_call.1} parent=113 // pred_check
          %p2114 = pneg %p318
        $region116: #{tpu_custom_call.1} parent=113 // pred_check_branch
          %2116 = sbr.rel (%p2114) target = $region118
        $region117: #{tpu_custom_call.1} parent=113 // pred_region
          %p2117 = scmp.lt.s32.totalorder %s29, 1
          %s2118 = scalar_select %p2117, %s29, 1
          %s2119 = smul.addr %s2118, 3
          %s2120 = smul.addr %s2119, 8
          %s2121 = scalar_lea.vmem %s12, %s2120
        $region118: #{tpu_custom_call.1} parent=113 // pred_fallthru
          _
      $region114: #{tpu_custom_call.1} parent=5 // pred_fallthru
        _
    $region6: #{tpu_custom_call.1} parent=1 // loop_footer
      %s22 = sadd.s32 1, %s18
    $region7: #{tpu_custom_call.1} parent=1 // loop_footer_branch
      %17 = sbr.rel target = $region3
    $region8: #{tpu_custom_call.1} parent=1 // loop_exit
      _

</llo_original>
